<compile_context>
chip_gen: v6e
topology: v6e:2x2x1
jax: 0.10.0
libtpu: 0.0.40
codegen_flags: <defaults>
</compile_context>

<pallas_src>
import functools

import jax
import jax.numpy as jnp
from jax import lax
from jax.experimental import pallas as pl
from jax.experimental.pallas import tpu as pltpu


def _cdiv(a, b):
    return (a + b - 1) // b


def _round_up(a, b):
    return _cdiv(a, b) * b


# Capability cache: flipped to False if pipeline_mode=pl.Buffered(1) fails to
# lower on the installed JAX version (then we fall back to double buffering).
_CAPS = {"single_buffer": True}


def _compiler_params(semantics, vmem_estimate):
    kwargs = dict(dimension_semantics=semantics)
    # Explicit VMEM budgeting only when the default scoped limit (16-32 MiB)
    # might be too small; clamp below v7x's 64 MiB physical ceiling.
    if vmem_estimate > 24 * 1024 * 1024:
        kwargs["vmem_limit_bytes"] = int(min(vmem_estimate * 1.25,
                                             60 * 1024 * 1024))
    return pltpu.CompilerParams(**kwargs)


def _const_spec(shape, single_buffer):
    """BlockSpec for a grid-invariant (same tile every step) operand."""
    if single_buffer:
        return pl.BlockSpec(shape, lambda i: (0, 0),
                            pipeline_mode=pl.Buffered(1))
    return pl.BlockSpec(shape, lambda i: (0, 0))


# ---------------------------------------------------------------------------
# Kernel 1: per-type soft quantization (matmul -> masked softmax -> matmul
#           -> argmax), the hot path of get_code_indices / quantize.
# ---------------------------------------------------------------------------
def _quantize_kernel(inv_tau_ref, q_ref, col_type_ref, x_ref, cbt_ref, cb_ref,
                     zq_ref, idx_ref):
    inv_tau = inv_tau_ref[0]                 # scalar (1/tau) in SMEM
    x = x_ref[...]                           # (TB, D)  bf16
    cbt = cbt_ref[...]                       # (D, N)   bf16 (lane-dense RHS)
    TB = x.shape[0]
    N = cbt.shape[1]

    # raw logits = x @ codebook.T  (f32 MXU accumulation)
    logits = jnp.dot(x, cbt, preferred_element_type=jnp.float32)    # (TB, N)

    # per-row sub-codebook mask (col_type precomputed in the wrapper -> no
    # per-element integer divide on the VALU)
    valid = col_type_ref[...] == q_ref[...]            # (1,N)==(TB,1)->(TB,N)

    # masked softmax numerator; tau folded into the exponent, mask folded into
    # the reductions (no materialized `masked` temp, no -inf through the exp).
    m = jnp.max(jnp.where(valid, logits, -jnp.inf), axis=-1, keepdims=True)
    p = jnp.where(valid, jnp.exp((logits - m) * inv_tau), 0.0)      # (TB, N)
    s = jnp.sum(p, axis=-1, keepdims=True)                          # (TB, 1)

    # second matmul on the UN-normalized weights; normalize the (TB, D) result
    # instead of the (TB, N) weights (identical math, ~N/D fewer multiplies).
    zq_unnorm = jnp.dot(p.astype(cb_ref.dtype), cb_ref[...],
                        preferred_element_type=jnp.float32)          # (TB, D)
    zq_ref[...] = (zq_unnorm *
                   pl.reciprocal(s, approx=True)).astype(zq_ref.dtype)

    # argmax on the masked logits (softmax is monotonic); first-max semantics.
    col_ids = lax.broadcasted_iota(jnp.int32, (TB, N), 1)
    idx_ref[...] = jnp.min(jnp.where(valid & (logits == m), col_ids, N),
                           axis=-1, keepdims=True).astype(jnp.int32)


def _quantize_call(inv_tau, q2, col_type, x_bf, cbt_bf, cb_bf, block_b,
                   out_dtype, single_buffer):
    B_pad, D = x_bf.shape
    N = cb_bf.shape[0]
    grid = B_pad // block_b

    cb_bufs = 1 if single_buffer else 2
    vmem_est = (cb_bufs * (2 * N * D * 2 + N * 4)          # cbt+cb bf16, col_type
                + 2 * block_b * (D * 2 + D * 4 + 8)        # x in, zq out, q/idx
                + 6 * block_b * N * 4)                     # (TB,N) temporaries

    return pl.pallas_call(
        _quantize_kernel,
        out_shape=(jax.ShapeDtypeStruct((B_pad, D), out_dtype),
                   jax.ShapeDtypeStruct((B_pad, 1), jnp.int32)),
        grid=(grid,),
        in_specs=[
            pl.BlockSpec(memory_space=pltpu.MemorySpace.SMEM),      # 1/tau
            pl.BlockSpec((block_b, 1), lambda i: (i, 0)),           # Q
            _const_spec((1, N), single_buffer),                     # col_type
            pl.BlockSpec((block_b, D), lambda i: (i, 0)),           # x rows
            _const_spec((D, N), single_buffer),                     # codebook^T
            _const_spec((N, D), single_buffer),                     # codebook
        ],
        out_specs=(
            pl.BlockSpec((block_b, D), lambda i: (i, 0)),           # quantized
            # TODO(synk): lane-dense (1, B) index output needs an in-kernel
            # sublane->lane transpose; kept the (TB, 1) store (tiny cost).
            pl.BlockSpec((block_b, 1), lambda i: (i, 0)),           # indices
        ),
        compiler_params=_compiler_params(("parallel",), vmem_est),
    )(inv_tau, q2, col_type, x_bf, cbt_bf, cb_bf)


# ---------------------------------------------------------------------------
# Kernel 2: uniform_loss — N x N cosine-similarity matmul, diagonal masking,
#           exp / row reductions, per-block partial sums (parallel grid).
# ---------------------------------------------------------------------------
def _uniform_loss_kernel(e_rows_ref, e_full_t_ref, out_ref,
                         *, num_per_type, inv_temp, n_total):
    i = pl.program_id(0)
    rows = e_rows_ref[...]                   # (TR, D) normalized embeddings
    full_t = e_full_t_ref[...]               # (D, N)  normalized, transposed
    TR = rows.shape[0]
    N = full_t.shape[1]

    sim = jnp.dot(rows, full_t, preferred_element_type=jnp.float32)  # (TR, N)

    row_ids = i * TR + lax.broadcasted_iota(jnp.int32, (TR, N), 0)
    col_ids = lax.broadcasted_iota(jnp.int32, (TR, N), 1)

    ex = jnp.exp(sim * inv_temp)
    ex = jnp.where(row_ids == col_ids, 0.0, ex)        # diag -> exp(-inf) = 0

    same = (row_ids // num_per_type) == (col_ids // num_per_type)
    sum_exp = jnp.sum(ex, axis=-1, keepdims=True)                     # (TR,1)
    pos_sum = jnp.sum(jnp.where(same, ex, 0.0), axis=-1, keepdims=True)

    # -log(pos/sum) = log(sum) - log(pos); mask padded rows, pre-divide by N.
    per_row = jnp.log(sum_exp) - jnp.log(pos_sum)                     # (TR,1)
    row_valid = (i * TR + lax.broadcasted_iota(jnp.int32, (TR, 1), 0)) < n_total
    per_row = jnp.where(row_valid, per_row, 0.0)
    partial = jnp.sum(per_row) * (1.0 / n_total)

    # lane-dense (8, 128) partial-sum block (unmasked vst); wrapper reduces.
    out_ref[...] = jnp.full((8, 128), partial, dtype=jnp.float32)


def _uniform_loss_call(e_rows, e_t, block_r, num_per_type, inv_temp, n_total,
                       single_buffer):
    N_pad, D = e_rows.shape
    N = e_t.shape[1]
    nb = N_pad // block_r

    tbl_bufs = 1 if single_buffer else 2
    vmem_est = (tbl_bufs * D * N * 4
                + 2 * block_r * D * 4 + 2 * 8 * 128 * 4
                + 6 * block_r * N * 4)

    return pl.pallas_call(
        functools.partial(_uniform_loss_kernel,
                          num_per_type=num_per_type,
                          inv_temp=inv_temp, n_total=n_total),
        out_shape=jax.ShapeDtypeStruct((8, 128 * nb), jnp.float32),
        grid=(nb,),
        in_specs=[
            pl.BlockSpec((block_r, D), lambda i: (i, 0)),           # row tile
            _const_spec((D, N), single_buffer),                     # table^T
        ],
        out_specs=pl.BlockSpec((8, 128), lambda i: (0, i)),         # partials
        compiler_params=_compiler_params(("parallel",), vmem_est),
    )(e_rows, e_t)


# ---------------------------------------------------------------------------
# Wrappers
# ---------------------------------------------------------------------------
def metoken_quantize(x, Q, codebook, tau, num_per_type, block_b=256):
    B, D = x.shape
    N = codebook.shape[0]
    out_dtype = x.dtype

    # Grid sizing: >= 2 blocks when B >= 16 so v7x megacore uses both TCs;
    # block_b = round_up(cdiv(B, grid), 8) minimizes padding for odd B.
    grid = max(1, _cdiv(B, block_b))
    if B >= 16:
        grid = max(grid, 2)
    block_b = _round_up(_cdiv(B, grid), 8)
    B_pad = grid * block_b

    Q = Q.reshape(-1).astype(jnp.int32)
    if B_pad != B:
        x = jnp.pad(x, ((0, B_pad - B), (0, 0)))
        Q = jnp.pad(Q, (0, B_pad - B))
    q2 = Q.reshape(B_pad, 1)

    # TODO(synk): cache these codebook-side casts/transposes across calls when
    # the codebook is reused within a step (pure host-graph change).
    x_bf = x.astype(jnp.bfloat16)
    cb_bf = codebook.astype(jnp.bfloat16)           # (N, D) for p @ cb
    cbt_bf = cb_bf.T                                # (D, N) lane-dense logits RHS
    col_type = (jnp.arange(N, dtype=jnp.int32) // num_per_type).reshape(1, N)
    inv_tau = (1.0 / jnp.asarray(tau, jnp.float32)).reshape(1)

    if _CAPS["single_buffer"]:
        try:
            zq, idx = _quantize_call(inv_tau, q2, col_type, x_bf, cbt_bf,
                                     cb_bf, block_b, out_dtype, True)
            return zq[:B], idx[:B, 0]
        except Exception:
            _CAPS["single_buffer"] = False      # fall back to double buffering
    zq, idx = _quantize_call(inv_tau, q2, col_type, x_bf, cbt_bf, cb_bf,
                             block_b, out_dtype, False)
    return zq[:B], idx[:B, 0]


def metoken_uniform_loss(codebook, num_per_type, temperature, block_r=256):
    N, D = codebook.shape

    # Row tiling: multiple-of-8 blocks, pad rows if needed (padded rows are
    # masked in-kernel); >= 2 blocks so v7x megacore splits the N x N work.
    block_r = min(block_r, _round_up(N, 8))
    nb = _cdiv(N, block_r)
    if N >= 16 and nb < 2:
        nb = 2
    block_r = _round_up(_cdiv(N, nb), 8)
    nb = _cdiv(N, block_r)
    N_pad = nb * block_r

    # F.normalize(p=2, dim=1) glue (elementwise; the N x N matmul is in-kernel)
    norm = jnp.sqrt(jnp.sum(codebook * codebook, axis=1, keepdims=True))
    e = (codebook / jnp.maximum(norm, 1e-12)).astype(jnp.float32)
    e_t = e.T                                                     # (D, N)
    e_rows = jnp.pad(e, ((0, N_pad - N), (0, 0))) if N_pad != N else e

    inv_temp = float(1.0 / temperature)
    if _CAPS["single_buffer"]:
        try:
            out = _uniform_loss_call(e_rows, e_t, block_r, num_per_type,
                                     inv_temp, N, True)
            return jnp.sum(out[0].reshape(nb, 128)[:, 0])
        except Exception:
            _CAPS["single_buffer"] = False
    out = _uniform_loss_call(e_rows, e_t, block_r, num_per_type,
                             inv_temp, N, False)
    return jnp.sum(out[0].reshape(nb, 128)[:, 0])


def metoken_forward(x, Q, codebook, tau, num_per_type, temperature):
    """Equivalent of MeToken.forward(x, Q, tau) when Q is not None."""
    quantized, encoding_indices = metoken_quantize(
        x, Q, codebook, tau, num_per_type)
    loss = 0.0
    uniform_loss = metoken_uniform_loss(codebook, num_per_type, temperature)
    return quantized, loss, uniform_loss, encoding_indices


# ---------------------------------------------------------------------------
# Pure-JAX reference (for a sanity check only)
# ---------------------------------------------------------------------------
def _ref_forward(x, Q, emb, tau, num_per_type, temperature):
    N = emb.shape[0]
    logits = (x @ emb.T) / tau
    col_type = jnp.arange(N) // num_per_type
    valid = col_type[None, :] == Q[:, None]
    masked = jnp.where(valid, logits, -jnp.inf)
    sim = jax.nn.softmax(masked, axis=-1)
    zq = sim @ emb
    idx = jnp.argmax(sim, axis=-1)

    e = emb / jnp.maximum(jnp.linalg.norm(emb, axis=1, keepdims=True), 1e-12)
    sm = e @ e.T
    sm = jnp.where(jnp.eye(N, dtype=bool), -jnp.inf, sm)
    ex = jnp.exp(sm / temperature)
    sum_exp = jnp.sum(ex, axis=1, keepdims=True)
    lbl = jnp.arange(N) // num_per_type
    leq = (lbl[None, :] == lbl[:, None]).astype(jnp.float32)
    pos = jnp.sum(ex * leq, axis=1, keepdims=True)
    ul = jnp.mean(-jnp.log(pos / sum_exp))
    return zq, idx, ul


if __name__ == "__main__":
    # Small, module-consistent shapes.
    embedding_dim = 64
    num_ptm_types = 4
    num_per_type = 128
    num_embeddings = num_ptm_types * num_per_type          # 512
    temperature = 0.07
    tau = 1.0
    B = 16

    key = jax.random.PRNGKey(0)
    k_emb, k_x, k_q = jax.random.split(key, 3)

    # nn.Embedding weights: N(0,1) then row-wise L2 normalize (as in __init__).
    emb = jax.random.normal(k_emb, (num_embeddings, embedding_dim),
                            dtype=jnp.float32)
    emb = emb / jnp.maximum(
        jnp.sqrt(jnp.sum(emb * emb, axis=1, keepdims=True)), 1e-12)

    x = jax.random.normal(k_x, (B, embedding_dim), dtype=jnp.float32)
    Q = jax.random.randint(k_q, (B,), 0, num_ptm_types, dtype=jnp.int32)

    quantized, loss, uniform_loss, encoding_indices = jax.block_until_ready(
        metoken_forward(x, Q, emb, tau, num_per_type, temperature))

    # Sanity check against a pure-JAX reference.
    zq_ref, idx_ref, ul_ref = _ref_forward(x, Q, emb, tau,
                                           num_per_type, temperature)
    assert jnp.all(encoding_indices // num_per_type == Q)
    assert jnp.allclose(quantized, zq_ref, rtol=2e-2, atol=2e-2)
    assert jnp.allclose(uniform_loss, ul_ref, rtol=2e-2, atol=2e-2)

    print("KERNEL_OK")
</pallas_src>

<mosaic_0001>
module attributes {stable_mosaic.version = 11 : i64} {
  func.func @_quantize_kernel(%arg0: i32, %arg1: memref<1xf32, #tpu.memory_space<smem>>, %arg2: memref<8x1xi32, #tpu.memory_space<vmem>>, %arg3: memref<1x512xi32, #tpu.memory_space<vmem>>, %arg4: memref<8x64xbf16, #tpu.memory_space<vmem>>, %arg5: memref<64x512xbf16, #tpu.memory_space<vmem>>, %arg6: memref<512x64xbf16, #tpu.memory_space<vmem>>, %arg7: memref<8x64xf32, #tpu.memory_space<vmem>>, %arg8: memref<8x1xi32, #tpu.memory_space<vmem>>) attributes {dimension_semantics = [#tpu.dimension_semantics<parallel>], iteration_bounds = array<i64: 2>, scalar_prefetch = 0 : i64, scratch_operands = 0 : i64, tpu.core_type = #tpu.core_type<tc>, window_params = [{transform_indices = @transform_0, window_bounds = array<i64: 1>}, {transform_indices = @transform_1, window_bounds = array<i64: 8, 1>}, {pipeline_mode = #tpu.pipeline_mode<synchronous>, transform_indices = @transform_2, window_bounds = array<i64: 1, 512>}, {transform_indices = @transform_3, window_bounds = array<i64: 8, 64>}, {pipeline_mode = #tpu.pipeline_mode<synchronous>, transform_indices = @transform_4, window_bounds = array<i64: 64, 512>}, {pipeline_mode = #tpu.pipeline_mode<synchronous>, transform_indices = @transform_5, window_bounds = array<i64: 512, 64>}, {transform_indices = @transform_6, window_bounds = array<i64: 8, 64>}, {transform_indices = @transform_7, window_bounds = array<i64: 8, 1>}]} {
    %c0 = arith.constant 0 : index
    %0 = memref.load %arg1[%c0] : memref<1xf32, #tpu.memory_space<smem>>
    %c0_0 = arith.constant 0 : index
    %c0_1 = arith.constant 0 : index
    %1 = vector.load %arg4[%c0_0, %c0_1] : memref<8x64xbf16, #tpu.memory_space<vmem>>, vector<8x64xbf16>
    %c0_2 = arith.constant 0 : index
    %c0_3 = arith.constant 0 : index
    %2 = vector.load %arg5[%c0_2, %c0_3] : memref<64x512xbf16, #tpu.memory_space<vmem>>, vector<64x512xbf16>
    %cst = arith.constant dense<0.000000e+00> : vector<8x512xf32>
    %3 = tpu.matmul %1, %2, %cst {dimension_numbers = #tpu.dot_dimension_numbers<[1], [0], [0], [1], [0, 0, 1, 1], [], []>} : vector<8x64xbf16>, vector<64x512xbf16>, vector<8x512xf32> -> vector<8x512xf32>
    %c0_4 = arith.constant 0 : index
    %c0_5 = arith.constant 0 : index
    %4 = vector.load %arg3[%c0_4, %c0_5] : memref<1x512xi32, #tpu.memory_space<vmem>>, vector<1x512xi32>
    %c0_6 = arith.constant 0 : index
    %c0_7 = arith.constant 0 : index
    %5 = vector.load %arg2[%c0_6, %c0_7] : memref<8x1xi32, #tpu.memory_space<vmem>>, vector<8x1xi32>
    %6 = vector.broadcast %4 : vector<1x512xi32> to vector<8x512xi32>
    %7 = vector.broadcast %5 : vector<8x1xi32> to vector<8x512xi32>
    %8 = arith.cmpi eq, %6, %7 : vector<8x512xi32>
    %cst_8 = arith.constant 0xFF800000 : f32
    %9 = vector.broadcast %cst_8 : f32 to vector<8x512xf32>
    %10 = arith.select %8, %3, %9 : vector<8x512xi1>, vector<8x512xf32>
    %cst_9 = arith.constant dense<0xFF800000> : vector<8xf32>
    %11 = vector.multi_reduction <maximumf>, %10, %cst_9 [1] : vector<8x512xf32> to vector<8xf32>
    %12 = vector.shape_cast %11 : vector<8xf32> to vector<8x1xf32>
    %13 = vector.broadcast %12 : vector<8x1xf32> to vector<8x512xf32>
    %14 = arith.subf %3, %13 : vector<8x512xf32>
    %15 = vector.broadcast %0 : f32 to vector<8x512xf32>
    %16 = arith.mulf %14, %15 : vector<8x512xf32>
    %17 = math.exp %16 : vector<8x512xf32>
    %cst_10 = arith.constant 0.000000e+00 : f32
    %18 = vector.broadcast %cst_10 : f32 to vector<8x512xf32>
    %19 = arith.select %8, %17, %18 : vector<8x512xi1>, vector<8x512xf32>
    %cst_11 = arith.constant dense<0.000000e+00> : vector<8xf32>
    %20 = vector.multi_reduction <add>, %19, %cst_11 [1] : vector<8x512xf32> to vector<8xf32>
    %21 = vector.shape_cast %20 : vector<8xf32> to vector<8x1xf32>
    %22 = arith.truncf %19 : vector<8x512xf32> to vector<8x512xbf16>
    %c0_12 = arith.constant 0 : index
    %c0_13 = arith.constant 0 : index
    %23 = vector.load %arg6[%c0_12, %c0_13] : memref<512x64xbf16, #tpu.memory_space<vmem>>, vector<512x64xbf16>
    %cst_14 = arith.constant dense<0.000000e+00> : vector<8x64xf32>
    %24 = tpu.matmul %22, %23, %cst_14 {dimension_numbers = #tpu.dot_dimension_numbers<[1], [0], [0], [1], [0, 0, 1, 1], [], []>} : vector<8x512xbf16>, vector<512x64xbf16>, vector<8x64xf32> -> vector<8x64xf32>
    %25 = tpu.reciprocal %21 {approx = true} : vector<8x1xf32> -> vector<8x1xf32>
    %26 = vector.broadcast %25 : vector<8x1xf32> to vector<8x64xf32>
    %27 = arith.mulf %24, %26 : vector<8x64xf32>
    %c0_15 = arith.constant 0 : index
    %c0_16 = arith.constant 0 : index
    %28 = vector.load %arg7[%c0_15, %c0_16] : memref<8x64xf32, #tpu.memory_space<vmem>>, vector<8x64xf32>
    tpu.vector_store %arg7[%c0_15, %c0_16], %27 {strides = array<i32>} : memref<8x64xf32, #tpu.memory_space<vmem>>, vector<8x64xf32>,
    %29 = tpu.iota {dimensions = array<i32: 1>} : vector<8x512xi32>
    %30 = vector.broadcast %12 : vector<8x1xf32> to vector<8x512xf32>
    %31 = arith.cmpf oeq, %3, %30 : vector<8x512xf32>
    %32 = arith.andi %8, %31 : vector<8x512xi1>
    %c512_i32 = arith.constant 512 : i32
    %33 = vector.broadcast %c512_i32 : i32 to vector<8x512xi32>
    %34 = arith.select %32, %29, %33 : vector<8x512xi1>, vector<8x512xi32>
    %cst_17 = arith.constant dense<2147483647> : vector<8xi32>
    %35 = vector.multi_reduction <minsi>, %34, %cst_17 [1] : vector<8x512xi32> to vector<8xi32>
    %36 = vector.shape_cast %35 : vector<8xi32> to vector<8x1xi32>
    %c0_18 = arith.constant 0 : index
    %c0_19 = arith.constant 0 : index
    %37 = vector.load %arg8[%c0_18, %c0_19] : memref<8x1xi32, #tpu.memory_space<vmem>>, vector<8x1xi32>
    tpu.vector_store %arg8[%c0_18, %c0_19], %36 {strides = array<i32>} : memref<8x1xi32, #tpu.memory_space<vmem>>, vector<8x1xi32>,
    return
  }
  func.func @transform_0(%arg0: i32) -> i32 {
    %c0_i32 = arith.constant 0 : i32
    %c0_i32_0 = arith.constant 0 : i32
    return %c0_i32 : i32
  }
  func.func @transform_1(%arg0: i32) -> (i32, i32) {
    %c0_i32 = arith.constant 0 : i32
    %c0_i32_0 = arith.constant 0 : i32
    return %arg0, %c0_i32 : i32, i32
  }
  func.func @transform_2(%arg0: i32) -> (i32, i32) {
    %c0_i32 = arith.constant 0 : i32
    %c0_i32_0 = arith.constant 0 : i32
    %c0_i32_1 = arith.constant 0 : i32
    return %c0_i32, %c0_i32_0 : i32, i32
  }
  func.func @transform_3(%arg0: i32) -> (i32, i32) {
    %c0_i32 = arith.constant 0 : i32
    %c0_i32_0 = arith.constant 0 : i32
    return %arg0, %c0_i32 : i32, i32
  }
  func.func @transform_4(%arg0: i32) -> (i32, i32) {
    %c0_i32 = arith.constant 0 : i32
    %c0_i32_0 = arith.constant 0 : i32
    %c0_i32_1 = arith.constant 0 : i32
    return %c0_i32, %c0_i32_0 : i32, i32
  }
  func.func @transform_5(%arg0: i32) -> (i32, i32) {
    %c0_i32 = arith.constant 0 : i32
    %c0_i32_0 = arith.constant 0 : i32
    %c0_i32_1 = arith.constant 0 : i32
    return %c0_i32, %c0_i32_0 : i32, i32
  }
  func.func @transform_6(%arg0: i32) -> (i32, i32) {
    %c0_i32 = arith.constant 0 : i32
    %c0_i32_0 = arith.constant 0 : i32
    return %arg0, %c0_i32 : i32, i32
  }
  func.func @transform_7(%arg0: i32) -> (i32, i32) {
    %c0_i32 = arith.constant 0 : i32
    %c0_i32_0 = arith.constant 0 : i32
    return %arg0, %c0_i32 : i32, i32
  }
}

module attributes {stable_mosaic.version = 11 : i64} {
  func.func @_quantize_kernel(%arg0: i32, %arg1: memref<1xf32, #tpu.memory_space<smem>>, %arg2: memref<8x1xi32, #tpu.memory_space<vmem>>, %arg3: memref<1x512xi32, #tpu.memory_space<vmem>>, %arg4: memref<8x64xbf16, #tpu.memory_space<vmem>>, %arg5: memref<64x512xbf16, #tpu.memory_space<vmem>>, %arg6: memref<512x64xbf16, #tpu.memory_space<vmem>>, %arg7: memref<8x64xf32, #tpu.memory_space<vmem>>, %arg8: memref<8x1xi32, #tpu.memory_space<vmem>>) attributes {dimension_semantics = [#tpu.dimension_semantics<parallel>], iteration_bounds = array<i64: 2>, scalar_prefetch = 0 : i64, scratch_operands = 0 : i64, tpu.core_type = #tpu.core_type<tc>, window_params = [{transform_indices = @transform_0, window_bounds = array<i64: 1>}, {transform_indices = @transform_1, window_bounds = array<i64: 8, 1>}, {pipeline_mode = #tpu.pipeline_mode<synchronous>, transform_indices = @transform_2, window_bounds = array<i64: 1, 512>}, {transform_indices = @transform_3, window_bounds = array<i64: 8, 64>}, {pipeline_mode = #tpu.pipeline_mode<synchronous>, transform_indices = @transform_4, window_bounds = array<i64: 64, 512>}, {pipeline_mode = #tpu.pipeline_mode<synchronous>, transform_indices = @transform_5, window_bounds = array<i64: 512, 64>}, {transform_indices = @transform_6, window_bounds = array<i64: 8, 64>}, {transform_indices = @transform_7, window_bounds = array<i64: 8, 1>}]} {
    %c0 = arith.constant 0 : index
    %0 = memref.load %arg1[%c0] : memref<1xf32, #tpu.memory_space<smem>>
    %c0_0 = arith.constant 0 : index
    %c0_1 = arith.constant 0 : index
    %1 = vector.load %arg4[%c0_0, %c0_1] : memref<8x64xbf16, #tpu.memory_space<vmem>>, vector<8x64xbf16>
    %c0_2 = arith.constant 0 : index
    %c0_3 = arith.constant 0 : index
    %2 = vector.load %arg5[%c0_2, %c0_3] : memref<64x512xbf16, #tpu.memory_space<vmem>>, vector<64x512xbf16>
    %cst = arith.constant dense<0.000000e+00> : vector<8x512xf32>
    %3 = tpu.matmul %1, %2, %cst {dimension_numbers = #tpu.dot_dimension_numbers<[1], [0], [0], [1], [0, 0, 1, 1], [], []>} : vector<8x64xbf16>, vector<64x512xbf16>, vector<8x512xf32> -> vector<8x512xf32>
    %c0_4 = arith.constant 0 : index
    %c0_5 = arith.constant 0 : index
    %4 = vector.load %arg3[%c0_4, %c0_5] : memref<1x512xi32, #tpu.memory_space<vmem>>, vector<1x512xi32>
    %c0_6 = arith.constant 0 : index
    %c0_7 = arith.constant 0 : index
    %5 = vector.load %arg2[%c0_6, %c0_7] : memref<8x1xi32, #tpu.memory_space<vmem>>, vector<8x1xi32>
    %6 = vector.broadcast %4 : vector<1x512xi32> to vector<8x512xi32>
    %7 = vector.broadcast %5 : vector<8x1xi32> to vector<8x512xi32>
    %8 = arith.cmpi eq, %6, %7 : vector<8x512xi32>
    %cst_8 = arith.constant 0xFF800000 : f32
    %9 = vector.broadcast %cst_8 : f32 to vector<8x512xf32>
    %10 = arith.select %8, %3, %9 : vector<8x512xi1>, vector<8x512xf32>
    %cst_9 = arith.constant dense<0xFF800000> : vector<8xf32>
    %11 = vector.multi_reduction <maximumf>, %10, %cst_9 [1] : vector<8x512xf32> to vector<8xf32>
    %12 = vector.shape_cast %11 : vector<8xf32> to vector<8x1xf32>
    %13 = vector.broadcast %12 : vector<8x1xf32> to vector<8x512xf32>
    %14 = arith.subf %3, %13 : vector<8x512xf32>
    %15 = vector.broadcast %0 : f32 to vector<8x512xf32>
    %16 = arith.mulf %14, %15 : vector<8x512xf32>
    %17 = math.exp %16 : vector<8x512xf32>
    %cst_10 = arith.constant 0.000000e+00 : f32
    %18 = vector.broadcast %cst_10 : f32 to vector<8x512xf32>
    %19 = arith.select %8, %17, %18 : vector<8x512xi1>, vector<8x512xf32>
    %cst_11 = arith.constant dense<0.000000e+00> : vector<8xf32>
    %20 = vector.multi_reduction <add>, %19, %cst_11 [1] : vector<8x512xf32> to vector<8xf32>
    %21 = vector.shape_cast %20 : vector<8xf32> to vector<8x1xf32>
    %22 = arith.truncf %19 : vector<8x512xf32> to vector<8x512xbf16>
    %c0_12 = arith.constant 0 : index
    %c0_13 = arith.constant 0 : index
    %23 = vector.load %arg6[%c0_12, %c0_13] : memref<512x64xbf16, #tpu.memory_space<vmem>>, vector<512x64xbf16>
    %cst_14 = arith.constant dense<0.000000e+00> : vector<8x64xf32>
    %24 = tpu.matmul %22, %23, %cst_14 {dimension_numbers = #tpu.dot_dimension_numbers<[1], [0], [0], [1], [0, 0, 1, 1], [], []>} : vector<8x512xbf16>, vector<512x64xbf16>, vector<8x64xf32> -> vector<8x64xf32>
    %25 = tpu.reciprocal %21 {approx = true} : vector<8x1xf32> -> vector<8x1xf32>
    %26 = vector.broadcast %25 : vector<8x1xf32> to vector<8x64xf32>
    %27 = arith.mulf %24, %26 : vector<8x64xf32>
    %c0_15 = arith.constant 0 : index
    %c0_16 = arith.constant 0 : index
    %28 = vector.load %arg7[%c0_15, %c0_16] : memref<8x64xf32, #tpu.memory_space<vmem>>, vector<8x64xf32>
    tpu.vector_store %arg7[%c0_15, %c0_16], %27 {strides = array<i32>} : memref<8x64xf32, #tpu.memory_space<vmem>>, vector<8x64xf32>,
    %29 = tpu.iota {dimensions = array<i32: 1>} : vector<8x512xi32>
    %30 = vector.broadcast %12 : vector<8x1xf32> to vector<8x512xf32>
    %31 = arith.cmpf oeq, %3, %30 : vector<8x512xf32>
    %32 = arith.andi %8, %31 : vector<8x512xi1>
    %c512_i32 = arith.constant 512 : i32
    %33 = vector.broadcast %c512_i32 : i32 to vector<8x512xi32>
    %34 = arith.select %32, %29, %33 : vector<8x512xi1>, vector<8x512xi32>
    %cst_17 = arith.constant dense<2147483647> : vector<8xi32>
    %35 = vector.multi_reduction <minsi>, %34, %cst_17 [1] : vector<8x512xi32> to vector<8xi32>
    %36 = vector.shape_cast %35 : vector<8xi32> to vector<8x1xi32>
    %c0_18 = arith.constant 0 : index
    %c0_19 = arith.constant 0 : index
    %37 = vector.load %arg8[%c0_18, %c0_19] : memref<8x1xi32, #tpu.memory_space<vmem>>, vector<8x1xi32>
    tpu.vector_store %arg8[%c0_18, %c0_19], %36 {strides = array<i32>} : memref<8x1xi32, #tpu.memory_space<vmem>>, vector<8x1xi32>,
    return
  }
  func.func @transform_0(%arg0: i32) -> i32 {
    %c0_i32 = arith.constant 0 : i32
    %c0_i32_0 = arith.constant 0 : i32
    return %c0_i32 : i32
  }
  func.func @transform_1(%arg0: i32) -> (i32, i32) {
    %c0_i32 = arith.constant 0 : i32
    %c0_i32_0 = arith.constant 0 : i32
    return %arg0, %c0_i32 : i32, i32
  }
  func.func @transform_2(%arg0: i32) -> (i32, i32) {
    %c0_i32 = arith.constant 0 : i32
    %c0_i32_0 = arith.constant 0 : i32
    %c0_i32_1 = arith.constant 0 : i32
    return %c0_i32, %c0_i32_0 : i32, i32
  }
  func.func @transform_3(%arg0: i32) -> (i32, i32) {
    %c0_i32 = arith.constant 0 : i32
    %c0_i32_0 = arith.constant 0 : i32
    return %arg0, %c0_i32 : i32, i32
  }
  func.func @transform_4(%arg0: i32) -> (i32, i32) {
    %c0_i32 = arith.constant 0 : i32
    %c0_i32_0 = arith.constant 0 : i32
    %c0_i32_1 = arith.constant 0 : i32
    return %c0_i32, %c0_i32_0 : i32, i32
  }
  func.func @transform_5(%arg0: i32) -> (i32, i32) {
    %c0_i32 = arith.constant 0 : i32
    %c0_i32_0 = arith.constant 0 : i32
    %c0_i32_1 = arith.constant 0 : i32
    return %c0_i32, %c0_i32_0 : i32, i32
  }
  func.func @transform_6(%arg0: i32) -> (i32, i32) {
    %c0_i32 = arith.constant 0 : i32
    %c0_i32_0 = arith.constant 0 : i32
    return %arg0, %c0_i32 : i32, i32
  }
  func.func @transform_7(%arg0: i32) -> (i32, i32) {
    %c0_i32 = arith.constant 0 : i32
    %c0_i32_0 = arith.constant 0 : i32
    return %arg0, %c0_i32 : i32, i32
  }
}

</mosaic_0001>

<llo_original>
// kernel: tpu_custom_call.1
$region0: #{tpu_custom_call.1}
  #allocation0 [shape = 'u32[]', space=smem, size = 0x4, offset = 0x4, fixed_abs, tag = 'smem constant byte address 0x4 - core index']
  #allocation1 [shape = 'u32[144,128]{1,0:T(1,128)}', space=vmem, size = 0x12000, scoped, tag = 'internal scratch']
  #allocation2 [shape = 'f32[1]{0:T(128)S(6)}', space=smem, size = 0x200, scoped, tag = 'scoped memory for tpu_custom_call.1']
  %s0 = inlined_call_operand.<no memory space> [shape: f32[1], index: 0, kind: input, shape index: {}]
  %s1 = inlined_call_operand.vmem [shape: s32[16,1], index: 1, kind: input, shape index: {}]
  %s2 = inlined_call_operand.vmem [shape: s32[1,512], index: 2, kind: input, shape index: {}]
  %s3 = inlined_call_operand.vmem [shape: bf16[16,64], index: 3, kind: input, shape index: {}]
  %s4 = inlined_call_operand.vmem [shape: bf16[64,512], index: 4, kind: input, shape index: {}]
  %s5 = inlined_call_operand.vmem [shape: bf16[512,64], index: 5, kind: input, shape index: {}]
  %s6 = inlined_call_operand.hbm [shape: f32[16,64], index: 6, kind: output, shape index: {0}]
  %s7 = inlined_call_operand.vmem [shape: s32[16,1], index: 7, kind: output, shape index: {1}]
  %8 = xla_tuple %s6, %s7
  %s9 = sld [smem:[#allocation0]]
  $region65: #{tpu_custom_call.1} parent=0
    _
  %s11 = ssub.s32 1, %s9
  %s12 = scalar_select 0, %s11, %s9
  %13 = sst [smem:[#allocation2]] %s0
  $region1: #{tpu_custom_call.1} parent=0
    #allocation3 [shape = 'u8[8192]{0}', space=vmem, size = 0x2000, scoped, tag = 'output window, operand 0']
    #allocation4 [shape = 's32[2]{0}', space=sflag, size = 0x8, scoped, tag = 'scoped memory for tpu_custom_call.1']
    %14 = vsyncpa [#allocation4], 0
    %s15 = scalar_lea.sflag [#allocation4], 1
    %16 = vsyncpa %s15, 0
    loop: start=0, step=1, limit=4
    $region2: #{tpu_custom_call.1} parent=1 // loop_pre_header
      _
    $region3: #{tpu_custom_call.1} parent=1 // loop_header
      %s18 = sphi 0, %s22
      %p19 = scmp.ge.s32.totalorder %s18, 4
      %s26 = sphi 0, %s26
      %s28 = sphi 0, %s26
      %s29 = sphi 0, %s28
      %s43 = sphi 0, %s29
      %s49 = sphi 0, %s51
      %s52 = sphi 0, %s49
      %s53 = sphi 0, %s52
      %s69 = sphi 0, %s53
      %s73 = sphi 0, %s73
      %s75 = sphi 0, %s73
      %s76 = sphi 0, %s75
      %s90 = sphi 0, %s76
      %s96 = sphi 0, %s98
      %s99 = sphi 0, %s96
      %s100 = sphi 0, %s99
      %s116 = sphi 0, %s100
      %s120 = sphi 0, %s120
      %s122 = sphi 0, %s120
      %s123 = sphi 0, %s122
      %s137 = sphi 0, %s123
      %s141 = sphi 0, %s141
      %s143 = sphi 0, %s141
      %s144 = sphi 0, %s143
      %s158 = sphi 0, %s144
      %s164 = sphi 0, %s166
      %s167 = sphi 0, %s164
      %s168 = sphi 0, %s167
      %s184 = sphi 0, %s168
      %s190 = sphi 0, %s192
      %s193 = sphi 0, %s190
      %s194 = sphi 0, %s193
      %s210 = sphi 0, %s194
    $region4: #{tpu_custom_call.1} parent=1 // loop_header_branch
      %21 = sbr.rel (%p19) target = $region8
    $region5: #{tpu_custom_call.1} parent=1 // loop_body
      %s23 = ssub.s32 %s18, 1
      %s24 = ssub.s32 %s18, 2
      %s25 = sadd.s32 %s18, 1
      %s27 = sadd.s32 %s26, 1
      %p30 = scmp.eq.s32.totalorder %s18, 1
      %p31 = scmp.ne.s32.totalorder %s26, %s28
      %p32 = scmp.eq.s32.totalorder %s18, 0
      %p33 = por %p31, %p32
      %p34 = scmp.ne.s32.totalorder %s26, %s28
      %p35 = scmp.eq.s32.totalorder %s23, 1
      %p36 = por %p34, %p35
      %p37 = scmp.ne.s32.totalorder %s28, %s29
      %p38 = scmp.eq.s32.totalorder %s23, 0
      %p39 = por %p37, %p38
      %p40 = scmp.ne.s32.totalorder %s28, %s29
      %p41 = scmp.eq.s32.totalorder %s24, 1
      %p42 = por %p40, %p41
      %p44 = scmp.ne.s32.totalorder %s29, %s43
      %p45 = scmp.eq.s32.totalorder %s24, 0
      %p46 = por %p44, %p45
      %s47 = ssub.s32 %s18, %s25
      %p48 = scmp.eq.s32.totalorder %s47, 0
      %s50 = sadd.s32 %s49, 1
      %s51 = scalar_select %p48, %s49, %s50
      %p54 = pneg %p48
      %p55 = scmp.eq.s32.totalorder %s18, 1
      %p56 = por %p54, %p55
      %p57 = scmp.ne.s32.totalorder %s49, %s52
      %p58 = scmp.eq.s32.totalorder %s18, 0
      %p59 = por %p57, %p58
      %p60 = scmp.ne.s32.totalorder %s49, %s52
      %p61 = scmp.eq.s32.totalorder %s23, 1
      %p62 = por %p60, %p61
      %p63 = scmp.ne.s32.totalorder %s52, %s53
      %p64 = scmp.eq.s32.totalorder %s23, 0
      %p65 = por %p63, %p64
      %p66 = scmp.ne.s32.totalorder %s52, %s53
      %p67 = scmp.eq.s32.totalorder %s24, 1
      %p68 = por %p66, %p67
      %p70 = scmp.ne.s32.totalorder %s53, %s69
      %p71 = scmp.eq.s32.totalorder %s24, 0
      %p72 = por %p70, %p71
      %s74 = sadd.s32 %s73, 1
      %p77 = scmp.eq.s32.totalorder %s18, 1
      %p78 = scmp.ne.s32.totalorder %s73, %s75
      %p79 = scmp.eq.s32.totalorder %s18, 0
      %p80 = por %p78, %p79
      %p81 = scmp.ne.s32.totalorder %s73, %s75
      %p82 = scmp.eq.s32.totalorder %s23, 1
      %p83 = por %p81, %p82
      %p84 = scmp.ne.s32.totalorder %s75, %s76
      %p85 = scmp.eq.s32.totalorder %s23, 0
      %p86 = por %p84, %p85
      %p87 = scmp.ne.s32.totalorder %s75, %s76
      %p88 = scmp.eq.s32.totalorder %s24, 1
      %p89 = por %p87, %p88
      %p91 = scmp.ne.s32.totalorder %s76, %s90
      %p92 = scmp.eq.s32.totalorder %s24, 0
      %p93 = por %p91, %p92
      %s94 = ssub.s32 %s18, %s25
      %p95 = scmp.eq.s32.totalorder %s94, 0
      %s97 = sadd.s32 %s96, 1
      %s98 = scalar_select %p95, %s96, %s97
      %p101 = pneg %p95
      %p102 = scmp.eq.s32.totalorder %s18, 1
      %p103 = por %p101, %p102
      %p104 = scmp.ne.s32.totalorder %s96, %s99
      %p105 = scmp.eq.s32.totalorder %s18, 0
      %p106 = por %p104, %p105
      %p107 = scmp.ne.s32.totalorder %s96, %s99
      %p108 = scmp.eq.s32.totalorder %s23, 1
      %p109 = por %p107, %p108
      %p110 = scmp.ne.s32.totalorder %s99, %s100
      %p111 = scmp.eq.s32.totalorder %s23, 0
      %p112 = por %p110, %p111
      %p113 = scmp.ne.s32.totalorder %s99, %s100
      %p114 = scmp.eq.s32.totalorder %s24, 1
      %p115 = por %p113, %p114
      %p117 = scmp.ne.s32.totalorder %s100, %s116
      %p118 = scmp.eq.s32.totalorder %s24, 0
      %p119 = por %p117, %p118
      %s121 = sadd.s32 %s120, 1
      %p124 = scmp.eq.s32.totalorder %s18, 1
      %p125 = scmp.ne.s32.totalorder %s120, %s122
      %p126 = scmp.eq.s32.totalorder %s18, 0
      %p127 = por %p125, %p126
      %p128 = scmp.ne.s32.totalorder %s120, %s122
      %p129 = scmp.eq.s32.totalorder %s23, 1
      %p130 = por %p128, %p129
      %p131 = scmp.ne.s32.totalorder %s122, %s123
      %p132 = scmp.eq.s32.totalorder %s23, 0
      %p133 = por %p131, %p132
      %p134 = scmp.ne.s32.totalorder %s122, %s123
      %p135 = scmp.eq.s32.totalorder %s24, 1
      %p136 = por %p134, %p135
      %p138 = scmp.ne.s32.totalorder %s123, %s137
      %p139 = scmp.eq.s32.totalorder %s24, 0
      %p140 = por %p138, %p139
      %s142 = sadd.s32 %s141, 1
      %p145 = scmp.eq.s32.totalorder %s18, 1
      %p146 = scmp.ne.s32.totalorder %s141, %s143
      %p147 = scmp.eq.s32.totalorder %s18, 0
      %p148 = por %p146, %p147
      %p149 = scmp.ne.s32.totalorder %s141, %s143
      %p150 = scmp.eq.s32.totalorder %s23, 1
      %p151 = por %p149, %p150
      %p152 = scmp.ne.s32.totalorder %s143, %s144
      %p153 = scmp.eq.s32.totalorder %s23, 0
      %p154 = por %p152, %p153
      %p155 = scmp.ne.s32.totalorder %s143, %s144
      %p156 = scmp.eq.s32.totalorder %s24, 1
      %p157 = por %p155, %p156
      %p159 = scmp.ne.s32.totalorder %s144, %s158
      %p160 = scmp.eq.s32.totalorder %s24, 0
      %p161 = por %p159, %p160
      %s162 = ssub.s32 %s18, %s25
      %p163 = scmp.eq.s32.totalorder %s162, 0
      %s165 = sadd.s32 %s164, 1
      %s166 = scalar_select %p163, %s164, %s165
      %p169 = pneg %p163
      %p170 = scmp.eq.s32.totalorder %s18, 1
      %p171 = por %p169, %p170
      %p172 = scmp.ne.s32.totalorder %s164, %s167
      %p173 = scmp.eq.s32.totalorder %s18, 0
      %p174 = por %p172, %p173
      %p175 = scmp.ne.s32.totalorder %s164, %s167
      %p176 = scmp.eq.s32.totalorder %s23, 1
      %p177 = por %p175, %p176
      %p178 = scmp.ne.s32.totalorder %s167, %s168
      %p179 = scmp.eq.s32.totalorder %s23, 0
      %p180 = por %p178, %p179
      %p181 = scmp.ne.s32.totalorder %s167, %s168
      %p182 = scmp.eq.s32.totalorder %s24, 1
      %p183 = por %p181, %p182
      %p185 = scmp.ne.s32.totalorder %s168, %s184
      %p186 = scmp.eq.s32.totalorder %s24, 0
      %p187 = por %p185, %p186
      %s188 = ssub.s32 %s18, %s25
      %p189 = scmp.eq.s32.totalorder %s188, 0
      %s191 = sadd.s32 %s190, 1
      %s192 = scalar_select %p189, %s190, %s191
      %p195 = pneg %p189
      %p196 = scmp.eq.s32.totalorder %s18, 1
      %p197 = por %p195, %p196
      %p198 = scmp.ne.s32.totalorder %s190, %s193
      %p199 = scmp.eq.s32.totalorder %s18, 0
      %p200 = por %p198, %p199
      %p201 = scmp.ne.s32.totalorder %s190, %s193
      %p202 = scmp.eq.s32.totalorder %s23, 1
      %p203 = por %p201, %p202
      %p204 = scmp.ne.s32.totalorder %s193, %s194
      %p205 = scmp.eq.s32.totalorder %s23, 0
      %p206 = por %p204, %p205
      %p207 = scmp.ne.s32.totalorder %s193, %s194
      %p208 = scmp.eq.s32.totalorder %s24, 1
      %p209 = por %p207, %p208
      %p211 = scmp.ne.s32.totalorder %s194, %s210
      %p212 = scmp.eq.s32.totalorder %s24, 0
      %p213 = por %p211, %p212
      %p214 = scmp.le.s32.totalorder 1, %s18
      %p215 = scmp.lt.s32.totalorder %s18, 3
      %p216 = pnand %p214, %p215
      %p217 = pneg %p216
      // Predicated region
      $region9: #{tpu_custom_call.1} parent=5 // pred_check
        _
      $region10: #{tpu_custom_call.1} parent=5 // pred_check_branch
        %219 = sbr.rel (%p216) target = $region12
      $region11: #{tpu_custom_call.1} parent=5 // pred_region
        %s220 = ssub.s32 %s18, 1
        // Predicated region
        $region13: #{tpu_custom_call.1} parent=11 // pred_check
          %p221 = pneg %p39
        $region14: #{tpu_custom_call.1} parent=11 // pred_check_branch
          %223 = sbr.rel (%p221) target = $region16
        $region15: #{tpu_custom_call.1} parent=11 // pred_region
          _
        $region16: #{tpu_custom_call.1} parent=11 // pred_fallthru
          _
        // Predicated region
        $region17: #{tpu_custom_call.1} parent=11 // pred_check
          %p224 = pneg %p86
        $region18: #{tpu_custom_call.1} parent=11 // pred_check_branch
          %226 = sbr.rel (%p224) target = $region20
        $region19: #{tpu_custom_call.1} parent=11 // pred_region
          _
        $region20: #{tpu_custom_call.1} parent=11 // pred_fallthru
          _
        // Predicated region
        $region21: #{tpu_custom_call.1} parent=11 // pred_check
          %p227 = pneg %p133
        $region22: #{tpu_custom_call.1} parent=11 // pred_check_branch
          %229 = sbr.rel (%p227) target = $region24
        $region23: #{tpu_custom_call.1} parent=11 // pred_region
          _
        $region24: #{tpu_custom_call.1} parent=11 // pred_fallthru
          _
        // Predicated region
        $region25: #{tpu_custom_call.1} parent=11 // pred_check
          %p230 = pneg %p154
        $region26: #{tpu_custom_call.1} parent=11 // pred_check_branch
          %232 = sbr.rel (%p230) target = $region28
        $region27: #{tpu_custom_call.1} parent=11 // pred_region
          _
        $region28: #{tpu_custom_call.1} parent=11 // pred_fallthru
          _
      $region12: #{tpu_custom_call.1} parent=5 // pred_fallthru
        _
      %p233 = scmp.lt.s32.totalorder %s18, 2
      // Predicated region
      $region29: #{tpu_custom_call.1} parent=5 // pred_check
        %p234 = pneg %p233
      $region30: #{tpu_custom_call.1} parent=5 // pred_check_branch
        %236 = sbr.rel (%p234) target = $region32
      $region31: #{tpu_custom_call.1} parent=5 // pred_region
        // Predicated region
        $region33: #{tpu_custom_call.1} parent=31 // pred_check
          %p237 = pneg %p59
        $region34: #{tpu_custom_call.1} parent=31 // pred_check_branch
          %239 = sbr.rel (%p237) target = $region36
        $region35: #{tpu_custom_call.1} parent=31 // pred_region
          %p240 = scmp.lt.s32.totalorder %s18, 1
          %s241 = scalar_select %p240, %s18, 1
          %s242 = smul.addr %s241, 8
          %s243 = scalar_lea.vmem %s1, %s242
        $region36: #{tpu_custom_call.1} parent=31 // pred_fallthru
          _
        // Predicated region
        $region37: #{tpu_custom_call.1} parent=31 // pred_check
          %p244 = pneg %p106
        $region38: #{tpu_custom_call.1} parent=31 // pred_check_branch
          %246 = sbr.rel (%p244) target = $region40
        $region39: #{tpu_custom_call.1} parent=31 // pred_region
          %p247 = scmp.lt.s32.totalorder %s18, 1
          %s248 = scalar_select %p247, %s18, 1
          %s249 = smul.addr %s248, 4
          %s250 = scalar_lea.vmem %s3, %s249
        $region40: #{tpu_custom_call.1} parent=31 // pred_fallthru
          _
      $region32: #{tpu_custom_call.1} parent=5 // pred_fallthru
        _
      %p251 = scmp.le.s32.totalorder 1, %s18
      %p252 = scmp.lt.s32.totalorder %s18, 3
      %p253 = pnand %p251, %p252
      %p254 = pneg %p253
      // Predicated region
      $region41: #{tpu_custom_call.1} parent=5 // pred_check
        _
      $region42: #{tpu_custom_call.1} parent=5 // pred_check_branch
        %256 = sbr.rel (%p253) target = $region44
      $region43: #{tpu_custom_call.1} parent=5 // pred_region
        %s257 = ssub.s32 %s18, 1
        %p258 = pneg %p39
        %p259 = pneg %p36
        %p260 = scmp.lt.s32.totalorder %s23, 1
        %s261 = scalar_select %p260, %s23, 1
        %s262 = smul.addr %s261, 8
        %s263 = scalar_lea.vmem %s1, %s262
        %p264 = pneg %p65
        %p265 = pneg %p62
        %p266 = pneg %p86
        %p267 = pneg %p83
        %p268 = scmp.lt.s32.totalorder %s23, 1
        %s269 = scalar_select %p268, %s23, 1
        %s270 = smul.addr %s269, 4
        %s271 = scalar_lea.vmem %s3, %s270
        %p272 = pneg %p112
        %p273 = pneg %p109
        %p274 = pneg %p133
        %p275 = pneg %p130
        %p276 = pneg %p154
        %p277 = pneg %p151
        %p278 = pneg %p180
        %p279 = pneg %p177
        %s280 = sand.u32 %s167, 1
        %s281 = scalar_lea.sflag [#allocation4], %s280
        %s282 = sand.u32 %s167, 1
        %s283 = smul.addr %s282, 8
        %s284 = scalar_lea.vmem [#allocation3], %s283
        %p285 = pneg %p206
        %p286 = pneg %p203
        %p287 = scmp.lt.s32.totalorder %s23, 1
        %s288 = scalar_select %p287, %s23, 1
        %s289 = smul.addr %s288, 8
        %s290 = scalar_lea.vmem %s7, %s289
        %p291 = scmp.lt.s32.totalorder %s23, 1
        %s292 = scalar_select %p291, %s23, 1
        %s293 = smul.addr %s292, 8
        %s294 = scalar_lea.vmem %s1, %s293
        %p295 = scmp.lt.s32.totalorder %s23, 1
        %s296 = scalar_select %p295, %s23, 1
        %s297 = smul.addr %s296, 4
        %s298 = scalar_lea.vmem %s3, %s297
        %p299 = scmp.lt.s32.totalorder %s23, 1
        %s300 = scalar_select %p299, %s23, 1
        %s301 = smul.addr %s300, 8
        %s302 = scalar_lea.vmem %s7, %s301
        %s304 = sld [smem:[#allocation2]]
        %v305 = vld [vmem:[%s298] sm:$0xf]
        %v306 = vld [vmem:[%s4] sm:$0xff]
        %v307 = vld [vmem:[%s4 + $0x8] sm:$0xff]
        %v308 = vld [vmem:[%s4 + $0x10] sm:$0xff]
        %v309 = vld [vmem:[%s4 + $0x18] sm:$0xff]
        %v310 = vld [vmem:[%s4 + $0x20] sm:$0xff]
        %v311 = vld [vmem:[%s4 + $0x28] sm:$0xff]
        %v312 = vld [vmem:[%s4 + $0x30] sm:$0xff]
        %v313 = vld [vmem:[%s4 + $0x38] sm:$0xff]
        %v314 = vld [vmem:[%s4 + $0x40] sm:$0xff]
        %v315 = vld [vmem:[%s4 + $0x48] sm:$0xff]
        %v316 = vld [vmem:[%s4 + $0x50] sm:$0xff]
        %v317 = vld [vmem:[%s4 + $0x58] sm:$0xff]
        %v318 = vld [vmem:[%s4 + $0x60] sm:$0xff]
        %v319 = vld [vmem:[%s4 + $0x68] sm:$0xff]
        %v320 = vld [vmem:[%s4 + $0x70] sm:$0xff]
        %v321 = vld [vmem:[%s4 + $0x78] sm:$0xff]
        %v338 = vunpack.c.l.b16 %v306
        %v339 = vunpack.c.h.b16 %v306
        %v340 = vunpack.c.l.b16 %v307
        %v341 = vunpack.c.h.b16 %v307
        %v342 = vunpack.c.l.b16 %v308
        %v343 = vunpack.c.h.b16 %v308
        %v344 = vunpack.c.l.b16 %v309
        %v345 = vunpack.c.h.b16 %v309
        %v346 = vunpack.c.l.b16 %v310
        %v347 = vunpack.c.h.b16 %v310
        %v348 = vunpack.c.l.b16 %v311
        %v349 = vunpack.c.h.b16 %v311
        %v350 = vunpack.c.l.b16 %v312
        %v351 = vunpack.c.h.b16 %v312
        %v352 = vunpack.c.l.b16 %v313
        %v353 = vunpack.c.h.b16 %v313
        %v354 = vunpack.c.l.b16 %v314
        %v355 = vunpack.c.h.b16 %v314
        %v356 = vunpack.c.l.b16 %v315
        %v357 = vunpack.c.h.b16 %v315
        %v358 = vunpack.c.l.b16 %v316
        %v359 = vunpack.c.h.b16 %v316
        %v360 = vunpack.c.l.b16 %v317
        %v361 = vunpack.c.h.b16 %v317
        %v362 = vunpack.c.l.b16 %v318
        %v363 = vunpack.c.h.b16 %v318
        %v364 = vunpack.c.l.b16 %v319
        %v365 = vunpack.c.h.b16 %v319
        %v366 = vunpack.c.l.b16 %v320
        %v367 = vunpack.c.h.b16 %v320
        %v368 = vunpack.c.l.b16 %v321
        %v369 = vunpack.c.h.b16 %v321
        %v370 = vpack.c.b16 %v342, %v338
        %v371 = vpack.c.b16 %v343, %v339
        %v372 = vpack.c.b16 %v344, %v340
        %v373 = vpack.c.b16 %v345, %v341
        %v374 = vpack.c.b16 %v350, %v346
        %v375 = vpack.c.b16 %v351, %v347
        %v376 = vpack.c.b16 %v352, %v348
        %v377 = vpack.c.b16 %v353, %v349
        %v378 = vpack.c.b16 %v358, %v354
        %v379 = vpack.c.b16 %v359, %v355
        %v380 = vpack.c.b16 %v360, %v356
        %v381 = vpack.c.b16 %v361, %v357
        %v382 = vpack.c.b16 %v366, %v362
        %v383 = vpack.c.b16 %v367, %v363
        %v384 = vpack.c.b16 %v368, %v364
        %v385 = vpack.c.b16 %v369, %v365
        %vm402 = vcmask 523264
        %v404 = vsel %vm402, %v305, 0
        %406 = vmatprep.subr.bf16.mxu0 0
        %407 = vmatpush1.bf16.msra.mxu0 0
        %408 = vmatprep.subr.bf16.mxu0 0
        %409 = vmatpush1.bf16.msra.mxu0 0
        %410 = vmatprep.subr.bf16.mxu0 0
        %411 = vmatpush1.bf16.msra.mxu0 0
        %412 = vmatprep.subr.bf16.mxu0 0
        %413 = vmatpush1.bf16.msra.mxu0 0
        %414 = vmatprep.subr.bf16.mxu0 %v383
        %415 = vmatpush1.bf16.msra.mxu0 %v382
        %416 = vmatprep.subr.bf16.mxu0 %v379
        %417 = vmatpush1.bf16.msra.mxu0 %v378
        %418 = vmatprep.subr.bf16.mxu0 %v375
        %419 = vmatpush1.bf16.msra.mxu0 %v374
        %420 = vmatprep.subr.bf16.mxu0 %v371
        %421 = vmatpush1.bf16.msra.mxu0 %v370
        %422 = vmatprep.subr.bf16.mxu0 0
        %423 = vmatpush2.bf16.msra.mxu0 0
        %424 = vmatprep.subr.bf16.mxu0 0
        %425 = vmatpush2.bf16.msra.mxu0 0
        %426 = vmatprep.subr.bf16.mxu0 0
        %427 = vmatpush2.bf16.msra.mxu0 0
        %428 = vmatprep.subr.bf16.mxu0 0
        %429 = vmatpush2.bf16.msra.mxu0 0
        %430 = vmatprep.subr.bf16.mxu0 0
        %431 = vmatpush2.bf16.msra.mxu0 0
        %432 = vmatprep.subr.bf16.mxu0 0
        %433 = vmatpush2.bf16.msra.mxu0 0
        %434 = vmatprep.subr.bf16.mxu0 0
        %435 = vmatpush2.bf16.msra.mxu0 0
        %436 = vmatprep.subr.bf16.mxu0 0
        %437 = vmatpush2.bf16.msra.mxu0 0
        %438 = vmatprep.mubr.bf16.mxu0 0
        %439 = vmatmul.mubr.bf16.gmra.mxu0 %v404
        %v440 = vpop.f32.mrf.mxu0
        %v441 = vadd.f32 0.0, %v440
        %v442 = vpop.f32.mrf.mxu0
        %v443 = vadd.f32 0.0, %v442
        %v444 = vpop.f32.mrf.mxu0
        %v445 = vpop.f32.mrf.mxu0
        %446 = vdwg.mxu0
        %447 = vmatprep.subr.bf16.mxu0 0
        %448 = vmatpush1.bf16.msra.mxu0 0
        %449 = vmatprep.subr.bf16.mxu0 0
        %450 = vmatpush1.bf16.msra.mxu0 0
        %451 = vmatprep.subr.bf16.mxu0 0
        %452 = vmatpush1.bf16.msra.mxu0 0
        %453 = vmatprep.subr.bf16.mxu0 0
        %454 = vmatpush1.bf16.msra.mxu0 0
        %455 = vmatprep.subr.bf16.mxu0 %v385
        %456 = vmatpush1.bf16.msra.mxu0 %v384
        %457 = vmatprep.subr.bf16.mxu0 %v381
        %458 = vmatpush1.bf16.msra.mxu0 %v380
        %459 = vmatprep.subr.bf16.mxu0 %v377
        %460 = vmatpush1.bf16.msra.mxu0 %v376
        %461 = vmatprep.subr.bf16.mxu0 %v373
        %462 = vmatpush1.bf16.msra.mxu0 %v372
        %463 = vmatprep.subr.bf16.mxu0 0
        %464 = vmatpush2.bf16.msra.mxu0 0
        %465 = vmatprep.subr.bf16.mxu0 0
        %466 = vmatpush2.bf16.msra.mxu0 0
        %467 = vmatprep.subr.bf16.mxu0 0
        %468 = vmatpush2.bf16.msra.mxu0 0
        %469 = vmatprep.subr.bf16.mxu0 0
        %470 = vmatpush2.bf16.msra.mxu0 0
        %471 = vmatprep.subr.bf16.mxu0 0
        %472 = vmatpush2.bf16.msra.mxu0 0
        %473 = vmatprep.subr.bf16.mxu0 0
        %474 = vmatpush2.bf16.msra.mxu0 0
        %475 = vmatprep.subr.bf16.mxu0 0
        %476 = vmatpush2.bf16.msra.mxu0 0
        %477 = vmatprep.subr.bf16.mxu0 0
        %478 = vmatpush2.bf16.msra.mxu0 0
        %479 = vmatprep.mubr.bf16.mxu0 0
        %480 = vmatmul.mubr.bf16.gmra.mxu0 %v404
        %v481 = vpop.f32.mrf.mxu0
        %v482 = vadd.f32 0.0, %v481
        %v483 = vpop.f32.mrf.mxu0
        %v484 = vadd.f32 0.0, %v483
        %v485 = vpop.f32.mrf.mxu0
        %v486 = vpop.f32.mrf.mxu0
        %487 = vdwg.mxu0
        %v488 = vld [vmem:[%s2] sm:$0xf]
        %v489 = vld [vmem:[%s294] sm:$0xff]
        %v490 = vlaneseq
        %v491 = vshrl.u32 %v490, 7
        %v492 = vsub.s32 0, %v491
        %v493 = vrot.slane %v488, %v492
        %v494 = vlaneseq
        %v495 = vshrl.u32 %v494, 7
        %v496 = vsub.s32 1, %v495
        %v497 = vrot.slane %v488, %v496
        %v498 = vlaneseq
        %v499 = vshrl.u32 %v498, 7
        %v500 = vsub.s32 2, %v499
        %v501 = vrot.slane %v488, %v500
        %v502 = vlaneseq
        %v503 = vshrl.u32 %v502, 7
        %v504 = vsub.s32 3, %v503
        %v505 = vrot.slane %v488, %v504
        %506 = vset.pattern.permute.xlu0 0
        %507 = vperm.xlu0 %506, %v489
        %v508 = vpop.permute.xlu0 %507
        %vm509 = vcmp.eq.s32.totalorder %v493, %v508
        %vm510 = vcmp.eq.s32.totalorder %v497, %v508
        %vm511 = vcmp.eq.s32.totalorder %v501, %v508
        %vm512 = vcmp.eq.s32.totalorder %v505, %v508
        %v513 = vsel %vm509, %v441, -inf
        %v514 = vsel %vm510, %v443, -inf
        %v515 = vsel %vm511, %v482, -inf
        %v516 = vsel %vm512, %v484, -inf
        %v517 = vmax.f32 %v513, %v514
        %v518 = vmax.f32 %v515, %v516
        %v519 = vmax.f32 %v517, %v518
        %520 = vmax.xlane.f32.xlu0 %v519
        %v521 = vpop.xlane.xlu0 %520
        %v522 = vsub.f32 %v441, %v521
        %v523 = vsub.f32 %v443, %v521
        %v524 = vsub.f32 %v482, %v521
        %v525 = vsub.f32 %v484, %v521
        %v526 = vstv %s304
        %v527 = vmul.f32 %v522, %v526
        %v528 = vmul.f32 %v523, %v526
        %v529 = vmul.f32 %v524, %v526
        %v530 = vmul.f32 %v525, %v526
        %v531 = vmul.f32 %v527, 1.442695
        %v532 = vpow.pop %v531
        %v533 = vmul.f32 %v528, 1.442695
        %v534 = vpow.pop %v533
        %v535 = vmul.f32 %v529, 1.442695
        %v536 = vpow.pop %v535
        %v537 = vmul.f32 %v530, 1.442695
        %v538 = vpow.pop %v537
        %v539 = vsel %vm509, %v532, 0.0
        %v540 = vsel %vm510, %v534, 0.0
        %v541 = vsel %vm511, %v536, 0.0
        %v542 = vsel %vm512, %v538, 0.0
        %v543 = vadd.f32 %v539, %v540
        %v544 = vadd.f32 %v543, %v541
        %v545 = vadd.f32 %v544, %v542
        %546 = vadd.xlane.f32.xlu0 %v545
        %v547 = vpop.xlane.xlu0 %546
        %v548 = vpack.c.bf16 %v539, %v539
        %v549 = vpack.c.bf16 %v540, %v540
        %v550 = vpack.c.bf16 %v541, %v541
        %v551 = vpack.c.bf16 %v542, %v542
        %v552 = vld [vmem:[%s5] sm:$0xf]
        %v553 = vld [vmem:[%s5 + $0x4] sm:$0xf]
        %v554 = vld [vmem:[%s5 + $0x8] sm:$0xf]
        %v555 = vld [vmem:[%s5 + $0xc] sm:$0xf]
        %v556 = vld [vmem:[%s5 + $0x10] sm:$0xf]
        %v557 = vld [vmem:[%s5 + $0x14] sm:$0xf]
        %v558 = vld [vmem:[%s5 + $0x18] sm:$0xf]
        %v559 = vld [vmem:[%s5 + $0x1c] sm:$0xf]
        %v560 = vld [vmem:[%s5 + $0x20] sm:$0xf]
        %v561 = vld [vmem:[%s5 + $0x24] sm:$0xf]
        %v562 = vld [vmem:[%s5 + $0x28] sm:$0xf]
        %v563 = vld [vmem:[%s5 + $0x2c] sm:$0xf]
        %v564 = vld [vmem:[%s5 + $0x30] sm:$0xf]
        %v565 = vld [vmem:[%s5 + $0x34] sm:$0xf]
        %v566 = vld [vmem:[%s5 + $0x38] sm:$0xf]
        %v567 = vld [vmem:[%s5 + $0x3c] sm:$0xf]
        %v568 = vld [vmem:[%s5 + $0x40] sm:$0xf]
        %v569 = vld [vmem:[%s5 + $0x44] sm:$0xf]
        %v570 = vld [vmem:[%s5 + $0x48] sm:$0xf]
        %v571 = vld [vmem:[%s5 + $0x4c] sm:$0xf]
        %v572 = vld [vmem:[%s5 + $0x50] sm:$0xf]
        %v573 = vld [vmem:[%s5 + $0x54] sm:$0xf]
        %v574 = vld [vmem:[%s5 + $0x58] sm:$0xf]
        %v575 = vld [vmem:[%s5 + $0x5c] sm:$0xf]
        %v576 = vld [vmem:[%s5 + $0x60] sm:$0xf]
        %v577 = vld [vmem:[%s5 + $0x64] sm:$0xf]
        %v578 = vld [vmem:[%s5 + $0x68] sm:$0xf]
        %v579 = vld [vmem:[%s5 + $0x6c] sm:$0xf]
        %v580 = vld [vmem:[%s5 + $0x70] sm:$0xf]
        %v581 = vld [vmem:[%s5 + $0x74] sm:$0xf]
        %v582 = vld [vmem:[%s5 + $0x78] sm:$0xf]
        %v583 = vld [vmem:[%s5 + $0x7c] sm:$0xf]
        %v584 = vld [vmem:[%s5 + $0x80] sm:$0xf]
        %v585 = vld [vmem:[%s5 + $0x84] sm:$0xf]
        %v586 = vld [vmem:[%s5 + $0x88] sm:$0xf]
        %v587 = vld [vmem:[%s5 + $0x8c] sm:$0xf]
        %v588 = vld [vmem:[%s5 + $0x90] sm:$0xf]
        %v589 = vld [vmem:[%s5 + $0x94] sm:$0xf]
        %v590 = vld [vmem:[%s5 + $0x98] sm:$0xf]
        %v591 = vld [vmem:[%s5 + $0x9c] sm:$0xf]
        %v592 = vld [vmem:[%s5 + $0xa0] sm:$0xf]
        %v593 = vld [vmem:[%s5 + $0xa4] sm:$0xf]
        %v594 = vld [vmem:[%s5 + $0xa8] sm:$0xf]
        %v595 = vld [vmem:[%s5 + $0xac] sm:$0xf]
        %v596 = vld [vmem:[%s5 + $0xb0] sm:$0xf]
        %v597 = vld [vmem:[%s5 + $0xb4] sm:$0xf]
        %v598 = vld [vmem:[%s5 + $0xb8] sm:$0xf]
        %v599 = vld [vmem:[%s5 + $0xbc] sm:$0xf]
        %v600 = vld [vmem:[%s5 + $0xc0] sm:$0xf]
        %v601 = vld [vmem:[%s5 + $0xc4] sm:$0xf]
        %v602 = vld [vmem:[%s5 + $0xc8] sm:$0xf]
        %v603 = vld [vmem:[%s5 + $0xcc] sm:$0xf]
        %v604 = vld [vmem:[%s5 + $0xd0] sm:$0xf]
        %v605 = vld [vmem:[%s5 + $0xd4] sm:$0xf]
        %v606 = vld [vmem:[%s5 + $0xd8] sm:$0xf]
        %v607 = vld [vmem:[%s5 + $0xdc] sm:$0xf]
        %v608 = vld [vmem:[%s5 + $0xe0] sm:$0xf]
        %v609 = vld [vmem:[%s5 + $0xe4] sm:$0xf]
        %v610 = vld [vmem:[%s5 + $0xe8] sm:$0xf]
        %v611 = vld [vmem:[%s5 + $0xec] sm:$0xf]
        %v612 = vld [vmem:[%s5 + $0xf0] sm:$0xf]
        %v613 = vld [vmem:[%s5 + $0xf4] sm:$0xf]
        %v614 = vld [vmem:[%s5 + $0xf8] sm:$0xf]
        %v615 = vld [vmem:[%s5 + $0xfc] sm:$0xf]
        %v680 = vunpack.c.l.b16 %v552
        %v681 = vunpack.c.l.b16 %v553
        %v682 = vunpack.c.l.b16 %v554
        %v683 = vunpack.c.l.b16 %v555
        %v684 = vunpack.c.l.b16 %v556
        %v685 = vunpack.c.l.b16 %v557
        %v686 = vunpack.c.l.b16 %v558
        %v687 = vunpack.c.l.b16 %v559
        %v688 = vunpack.c.l.b16 %v560
        %v689 = vunpack.c.l.b16 %v561
        %v690 = vunpack.c.l.b16 %v562
        %v691 = vunpack.c.l.b16 %v563
        %v692 = vunpack.c.l.b16 %v564
        %v693 = vunpack.c.l.b16 %v565
        %v694 = vunpack.c.l.b16 %v566
        %v695 = vunpack.c.l.b16 %v567
        %v696 = vunpack.c.l.b16 %v568
        %v697 = vunpack.c.l.b16 %v569
        %v698 = vunpack.c.l.b16 %v570
        %v699 = vunpack.c.l.b16 %v571
        %v700 = vunpack.c.l.b16 %v572
        %v701 = vunpack.c.l.b16 %v573
        %v702 = vunpack.c.l.b16 %v574
        %v703 = vunpack.c.l.b16 %v575
        %v704 = vunpack.c.l.b16 %v576
        %v705 = vunpack.c.l.b16 %v577
        %v706 = vunpack.c.l.b16 %v578
        %v707 = vunpack.c.l.b16 %v579
        %v708 = vunpack.c.l.b16 %v580
        %v709 = vunpack.c.l.b16 %v581
        %v710 = vunpack.c.l.b16 %v582
        %v711 = vunpack.c.l.b16 %v583
        %v712 = vunpack.c.l.b16 %v584
        %v713 = vunpack.c.l.b16 %v585
        %v714 = vunpack.c.l.b16 %v586
        %v715 = vunpack.c.l.b16 %v587
        %v716 = vunpack.c.l.b16 %v588
        %v717 = vunpack.c.l.b16 %v589
        %v718 = vunpack.c.l.b16 %v590
        %v719 = vunpack.c.l.b16 %v591
        %v720 = vunpack.c.l.b16 %v592
        %v721 = vunpack.c.l.b16 %v593
        %v722 = vunpack.c.l.b16 %v594
        %v723 = vunpack.c.l.b16 %v595
        %v724 = vunpack.c.l.b16 %v596
        %v725 = vunpack.c.l.b16 %v597
        %v726 = vunpack.c.l.b16 %v598
        %v727 = vunpack.c.l.b16 %v599
        %v728 = vunpack.c.l.b16 %v600
        %v729 = vunpack.c.l.b16 %v601
        %v730 = vunpack.c.l.b16 %v602
        %v731 = vunpack.c.l.b16 %v603
        %v732 = vunpack.c.l.b16 %v604
        %v733 = vunpack.c.l.b16 %v605
        %v734 = vunpack.c.l.b16 %v606
        %v735 = vunpack.c.l.b16 %v607
        %v736 = vunpack.c.l.b16 %v608
        %v737 = vunpack.c.l.b16 %v609
        %v738 = vunpack.c.l.b16 %v610
        %v739 = vunpack.c.l.b16 %v611
        %v740 = vunpack.c.l.b16 %v612
        %v741 = vunpack.c.l.b16 %v613
        %v742 = vunpack.c.l.b16 %v614
        %v743 = vunpack.c.l.b16 %v615
        %v744 = vpack.c.b16 %v681, %v680
        %v745 = vpack.c.b16 %v683, %v682
        %v746 = vpack.c.b16 %v685, %v684
        %v747 = vpack.c.b16 %v687, %v686
        %v748 = vpack.c.b16 %v689, %v688
        %v749 = vpack.c.b16 %v691, %v690
        %v750 = vpack.c.b16 %v693, %v692
        %v751 = vpack.c.b16 %v695, %v694
        %v752 = vpack.c.b16 %v697, %v696
        %v753 = vpack.c.b16 %v699, %v698
        %v754 = vpack.c.b16 %v701, %v700
        %v755 = vpack.c.b16 %v703, %v702
        %v756 = vpack.c.b16 %v705, %v704
        %v757 = vpack.c.b16 %v707, %v706
        %v758 = vpack.c.b16 %v709, %v708
        %v759 = vpack.c.b16 %v711, %v710
        %v760 = vpack.c.b16 %v713, %v712
        %v761 = vpack.c.b16 %v715, %v714
        %v762 = vpack.c.b16 %v717, %v716
        %v763 = vpack.c.b16 %v719, %v718
        %v764 = vpack.c.b16 %v721, %v720
        %v765 = vpack.c.b16 %v723, %v722
        %v766 = vpack.c.b16 %v725, %v724
        %v767 = vpack.c.b16 %v727, %v726
        %v768 = vpack.c.b16 %v729, %v728
        %v769 = vpack.c.b16 %v731, %v730
        %v770 = vpack.c.b16 %v733, %v732
        %v771 = vpack.c.b16 %v735, %v734
        %v772 = vpack.c.b16 %v737, %v736
        %v773 = vpack.c.b16 %v739, %v738
        %v774 = vpack.c.b16 %v741, %v740
        %v775 = vpack.c.b16 %v743, %v742
        %808 = vmatprep.subr.bf16.mxu0 0
        %809 = vmatpush1.bf16.msra.mxu0 %v751
        %810 = vmatprep.subr.bf16.mxu0 0
        %811 = vmatpush1.bf16.msra.mxu0 %v750
        %812 = vmatprep.subr.bf16.mxu0 0
        %813 = vmatpush1.bf16.msra.mxu0 %v749
        %814 = vmatprep.subr.bf16.mxu0 0
        %815 = vmatpush1.bf16.msra.mxu0 %v748
        %816 = vmatprep.subr.bf16.mxu0 0
        %817 = vmatpush1.bf16.msra.mxu0 %v747
        %818 = vmatprep.subr.bf16.mxu0 0
        %819 = vmatpush1.bf16.msra.mxu0 %v746
        %820 = vmatprep.subr.bf16.mxu0 0
        %821 = vmatpush1.bf16.msra.mxu0 %v745
        %822 = vmatprep.subr.bf16.mxu0 0
        %823 = vmatpush1.bf16.msra.mxu0 %v744
        %824 = vmatprep.subr.bf16.mxu0 0
        %825 = vmatpush2.bf16.msra.mxu0 %v759
        %826 = vmatprep.subr.bf16.mxu0 0
        %827 = vmatpush2.bf16.msra.mxu0 %v758
        %828 = vmatprep.subr.bf16.mxu0 0
        %829 = vmatpush2.bf16.msra.mxu0 %v757
        %830 = vmatprep.subr.bf16.mxu0 0
        %831 = vmatpush2.bf16.msra.mxu0 %v756
        %832 = vmatprep.subr.bf16.mxu0 0
        %833 = vmatpush2.bf16.msra.mxu0 %v755
        %834 = vmatprep.subr.bf16.mxu0 0
        %835 = vmatpush2.bf16.msra.mxu0 %v754
        %836 = vmatprep.subr.bf16.mxu0 0
        %837 = vmatpush2.bf16.msra.mxu0 %v753
        %838 = vmatprep.subr.bf16.mxu0 0
        %839 = vmatpush2.bf16.msra.mxu0 %v752
        %840 = vmatprep.mubr.bf16.mxu0 %v549
        %841 = vmatmul.mubr.bf16.gmra.mxu0 %v548
        %v842 = vpop.f32.mrf.mxu0
        %v843 = vadd.f32 0.0, %v842
        %v844 = vpop.f32.mrf.mxu0
        %v845 = vpop.f32.mrf.mxu0
        %v846 = vpop.f32.mrf.mxu0
        %847 = vdwg.mxu0
        %848 = vmatprep.subr.bf16.mxu0 0
        %849 = vmatpush1.bf16.msra.mxu0 %v767
        %850 = vmatprep.subr.bf16.mxu0 0
        %851 = vmatpush1.bf16.msra.mxu0 %v766
        %852 = vmatprep.subr.bf16.mxu0 0
        %853 = vmatpush1.bf16.msra.mxu0 %v765
        %854 = vmatprep.subr.bf16.mxu0 0
        %855 = vmatpush1.bf16.msra.mxu0 %v764
        %856 = vmatprep.subr.bf16.mxu0 0
        %857 = vmatpush1.bf16.msra.mxu0 %v763
        %858 = vmatprep.subr.bf16.mxu0 0
        %859 = vmatpush1.bf16.msra.mxu0 %v762
        %860 = vmatprep.subr.bf16.mxu0 0
        %861 = vmatpush1.bf16.msra.mxu0 %v761
        %862 = vmatprep.subr.bf16.mxu0 0
        %863 = vmatpush1.bf16.msra.mxu0 %v760
        %864 = vmatprep.subr.bf16.mxu0 0
        %865 = vmatpush2.bf16.msra.mxu0 %v775
        %866 = vmatprep.subr.bf16.mxu0 0
        %867 = vmatpush2.bf16.msra.mxu0 %v774
        %868 = vmatprep.subr.bf16.mxu0 0
        %869 = vmatpush2.bf16.msra.mxu0 %v773
        %870 = vmatprep.subr.bf16.mxu0 0
        %871 = vmatpush2.bf16.msra.mxu0 %v772
        %872 = vmatprep.subr.bf16.mxu0 0
        %873 = vmatpush2.bf16.msra.mxu0 %v771
        %874 = vmatprep.subr.bf16.mxu0 0
        %875 = vmatpush2.bf16.msra.mxu0 %v770
        %876 = vmatprep.subr.bf16.mxu0 0
        %877 = vmatpush2.bf16.msra.mxu0 %v769
        %878 = vmatprep.subr.bf16.mxu0 0
        %879 = vmatpush2.bf16.msra.mxu0 %v768
        %880 = vmatprep.mubr.bf16.mxu0 %v551
        %881 = vmatmul.mubr.bf16.gmra.mxu0 %v550
        %v882 = vpop.f32.mrf.mxu0
        %v883 = vadd.f32 %v843, %v882
        %v884 = vpop.f32.mrf.mxu0
        %v885 = vpop.f32.mrf.mxu0
        %v886 = vpop.f32.mrf.mxu0
        %887 = vdwg.mxu0
        %v888 = vrcp.pop %v547
        %v889 = vmul.f32 %v883, %v888
        %890 = vst.msk [vmem:[%s284] sm:$0xff] %vm402, %v889
        %v891 = vlaneseq
        %v892 = vand.u32 %v891, 127
        %v893 = vadd.s32 %v892, 128
        %v894 = vadd.s32 %v892, 256
        %v895 = vadd.s32 %v892, 384
        %vm896 = vcmp.eq.f32.partialorder %v441, %v521
        %vm897 = vcmp.eq.f32.partialorder %v443, %v521
        %vm898 = vcmp.eq.f32.partialorder %v482, %v521
        %vm899 = vcmp.eq.f32.partialorder %v484, %v521
        %vm900 = vmand %vm509, %vm896
        %vm901 = vmand %vm510, %vm897
        %vm902 = vmand %vm511, %vm898
        %vm903 = vmand %vm512, %vm899
        %v904 = vsel %vm900, %v892, 512
        %v905 = vsel %vm901, %v893, 512
        %v906 = vsel %vm902, %v894, 512
        %v907 = vsel %vm903, %v895, 512
        %vm908 = vcmp.lt.s32.totalorder %v904, %v905
        %v909 = vsel %vm908, %v904, %v905
        %vm910 = vcmp.lt.s32.totalorder %v906, %v907
        %v911 = vsel %vm910, %v906, %v907
        %vm912 = vcmp.lt.s32.totalorder %v909, %v911
        %v913 = vsel %vm912, %v909, %v911
        %v914 = vand.u32 %v913, 65535
        %v915 = vshra.s32 %v913, 16
        %v916 = vcvt.s32.f32 %v914
        %v917 = vcvt.s32.f32 %v915
        %918 = vmin.xlane.f32.xlu0 %v917
        %v919 = vpop.xlane.xlu0 %918
        %vm920 = vcmp.eq.f32.partialorder %v917, %v919
        %v921 = vsel %vm920, %v916, inf
        %922 = vmin.xlane.f32.xlu0 %v921
        %v923 = vpop.xlane.xlu0 %922
        %v924 = vcvt.f32.s32 %v923
        %v925 = vcvt.f32.s32 %v919
        %v926 = vshll.u32 %v925, 16
        %v927 = vadd.s32 %v926, %v924
        %vm928 = vcmask 7168
        %929 = vst.msk [vmem:[%s302] sm:$0xff] %vm928, %v927
        %s930 = sand.u32 %s167, 1
        %s931 = scalar_lea.sflag [#allocation4], %s930
        %s932 = sand.u32 %s167, 1
        %s933 = smul.addr %s932, 8
        %s934 = scalar_lea.vmem [#allocation3], %s933
        %p935 = scmp.lt.s32.totalorder %s23, 1
        %s936 = scalar_select %p935, %s23, 1
        %s937 = smul.addr %s936, 8
        %s938 = scalar_lea.vmem %s7, %s937
        // Predicated region
        $region45: #{tpu_custom_call.1} parent=43 // pred_check
          %p939 = pneg %p177
        $region46: #{tpu_custom_call.1} parent=43 // pred_check_branch
          %941 = sbr.rel (%p939) target = $region48
        $region47: #{tpu_custom_call.1} parent=43 // pred_region
          %s943 = ssub.s32 128, 128
          %944 = vsyncadd %s931, %s943
          %s945 = smul.addr %s23, 128
          %s946 = scalar_lea.hbm %s6, %s945
          %s948 = sshll.u32 %s934, 4
          %s949 = int_to_ptr.vmem [resolvable:$true] %s948
          %951 = dma.vmem_to_hbm [thread:$0]  %s949, 128, %s946, %s931
        $region48: #{tpu_custom_call.1} parent=43 // pred_fallthru
          _
        // Predicated region
        $region49: #{tpu_custom_call.1} parent=43 // pred_check
          %p952 = pneg %p203
        $region50: #{tpu_custom_call.1} parent=43 // pred_check_branch
          %954 = sbr.rel (%p952) target = $region52
        $region51: #{tpu_custom_call.1} parent=43 // pred_region
          _
        $region52: #{tpu_custom_call.1} parent=43 // pred_fallthru
          _
      $region44: #{tpu_custom_call.1} parent=5 // pred_fallthru
        _
      %p955 = scmp.le.s32.totalorder 2, %s18
      // Predicated region
      $region53: #{tpu_custom_call.1} parent=5 // pred_check
        %p956 = pneg %p955
      $region54: #{tpu_custom_call.1} parent=5 // pred_check_branch
        %958 = sbr.rel (%p956) target = $region56
      $region55: #{tpu_custom_call.1} parent=5 // pred_region
        %s959 = ssub.s32 %s18, 2
        // Predicated region
        $region57: #{tpu_custom_call.1} parent=55 // pred_check
          %p960 = pneg %p183
        $region58: #{tpu_custom_call.1} parent=55 // pred_check_branch
          %962 = sbr.rel (%p960) target = $region60
        $region59: #{tpu_custom_call.1} parent=55 // pred_region
          %s963 = sand.u32 %s168, 1
          %s964 = scalar_lea.sflag [#allocation4], %s963
          %s965 = sand.u32 %s168, 1
          %s966 = smul.addr %s965, 8
          %s967 = scalar_lea.vmem [#allocation3], %s966
          %968 = dma.done %s964, 128
        $region60: #{tpu_custom_call.1} parent=55 // pred_fallthru
          _
        // Predicated region
        $region61: #{tpu_custom_call.1} parent=55 // pred_check
          %p969 = pneg %p209
        $region62: #{tpu_custom_call.1} parent=55 // pred_check_branch
          %971 = sbr.rel (%p969) target = $region64
        $region63: #{tpu_custom_call.1} parent=55 // pred_region
          %p972 = scmp.lt.s32.totalorder %s24, 1
          %s973 = scalar_select %p972, %s24, 1
          %s974 = smul.addr %s973, 8
          %s975 = scalar_lea.vmem %s7, %s974
        $region64: #{tpu_custom_call.1} parent=55 // pred_fallthru
          _
      $region56: #{tpu_custom_call.1} parent=5 // pred_fallthru
        _
    $region6: #{tpu_custom_call.1} parent=1 // loop_footer
      %s22 = sadd.s32 1, %s18
    $region7: #{tpu_custom_call.1} parent=1 // loop_footer_branch
      %17 = sbr.rel target = $region3
    $region8: #{tpu_custom_call.1} parent=1 // loop_exit
      _
    %976 = vsyncpa [#allocation4], 1
    %s977 = scalar_lea.sflag [#allocation4], 1
    %978 = vsyncpa %s977, 1

// kernel: tpu_custom_call.1
$region0: #{tpu_custom_call.1}
  #allocation0 [shape = 'u32[]', space=smem, size = 0x4, offset = 0x4, fixed_abs, tag = 'smem constant byte address 0x4 - core index']
  #allocation1 [shape = 'u32[144,128]{1,0:T(1,128)}', space=vmem, size = 0x12000, scoped, tag = 'internal scratch']
  #allocation2 [shape = 'f32[1]{0:T(128)S(6)}', space=smem, size = 0x200, scoped, tag = 'scoped memory for tpu_custom_call.1']
  %s0 = inlined_call_operand.<no memory space> [shape: f32[1], index: 0, kind: input, shape index: {}]
  %s1 = inlined_call_operand.vmem [shape: s32[16,1], index: 1, kind: input, shape index: {}]
  %s2 = inlined_call_operand.vmem [shape: s32[1,512], index: 2, kind: input, shape index: {}]
  %s3 = inlined_call_operand.vmem [shape: bf16[16,64], index: 3, kind: input, shape index: {}]
  %s4 = inlined_call_operand.vmem [shape: bf16[64,512], index: 4, kind: input, shape index: {}]
  %s5 = inlined_call_operand.vmem [shape: bf16[512,64], index: 5, kind: input, shape index: {}]
  %s6 = inlined_call_operand.hbm [shape: f32[16,64], index: 6, kind: output, shape index: {0}]
  %s7 = inlined_call_operand.vmem [shape: s32[16,1], index: 7, kind: output, shape index: {1}]
  %8 = xla_tuple %s6, %s7
  %s9 = sld [smem:[#allocation0]]
  $region65: #{tpu_custom_call.1} parent=0
    _
  %s11 = ssub.s32 1, %s9
  %s12 = scalar_select 0, %s11, %s9
  %13 = sst [smem:[#allocation2]] %s0
  $region1: #{tpu_custom_call.1} parent=0
    #allocation3 [shape = 'u8[8192]{0}', space=vmem, size = 0x2000, scoped, tag = 'output window, operand 0']
    #allocation4 [shape = 's32[2]{0}', space=sflag, size = 0x8, scoped, tag = 'scoped memory for tpu_custom_call.1']
    %14 = vsyncpa [#allocation4], 0
    %s15 = scalar_lea.sflag [#allocation4], 1
    %16 = vsyncpa %s15, 0
    loop: start=0, step=1, limit=4
    $region2: #{tpu_custom_call.1} parent=1 // loop_pre_header
      _
    $region3: #{tpu_custom_call.1} parent=1 // loop_header
      %s18 = sphi 0, %s22
      %p19 = scmp.ge.s32.totalorder %s18, 4
      %s26 = sphi 0, %s26
      %s28 = sphi 0, %s26
      %s29 = sphi 0, %s28
      %s43 = sphi 0, %s29
      %s49 = sphi 0, %s51
      %s52 = sphi 0, %s49
      %s53 = sphi 0, %s52
      %s69 = sphi 0, %s53
      %s73 = sphi 0, %s73
      %s75 = sphi 0, %s73
      %s76 = sphi 0, %s75
      %s90 = sphi 0, %s76
      %s96 = sphi 0, %s98
      %s99 = sphi 0, %s96
      %s100 = sphi 0, %s99
      %s116 = sphi 0, %s100
      %s120 = sphi 0, %s120
      %s122 = sphi 0, %s120
      %s123 = sphi 0, %s122
      %s137 = sphi 0, %s123
      %s141 = sphi 0, %s141
      %s143 = sphi 0, %s141
      %s144 = sphi 0, %s143
      %s158 = sphi 0, %s144
      %s164 = sphi 0, %s166
      %s167 = sphi 0, %s164
      %s168 = sphi 0, %s167
      %s184 = sphi 0, %s168
      %s190 = sphi 0, %s192
      %s193 = sphi 0, %s190
      %s194 = sphi 0, %s193
      %s210 = sphi 0, %s194
    $region4: #{tpu_custom_call.1} parent=1 // loop_header_branch
      %21 = sbr.rel (%p19) target = $region8
    $region5: #{tpu_custom_call.1} parent=1 // loop_body
      %s23 = ssub.s32 %s18, 1
      %s24 = ssub.s32 %s18, 2
      %s25 = sadd.s32 %s18, 1
      %s27 = sadd.s32 %s26, 1
      %p30 = scmp.eq.s32.totalorder %s18, 1
      %p31 = scmp.ne.s32.totalorder %s26, %s28
      %p32 = scmp.eq.s32.totalorder %s18, 0
      %p33 = por %p31, %p32
      %p34 = scmp.ne.s32.totalorder %s26, %s28
      %p35 = scmp.eq.s32.totalorder %s23, 1
      %p36 = por %p34, %p35
      %p37 = scmp.ne.s32.totalorder %s28, %s29
      %p38 = scmp.eq.s32.totalorder %s23, 0
      %p39 = por %p37, %p38
      %p40 = scmp.ne.s32.totalorder %s28, %s29
      %p41 = scmp.eq.s32.totalorder %s24, 1
      %p42 = por %p40, %p41
      %p44 = scmp.ne.s32.totalorder %s29, %s43
      %p45 = scmp.eq.s32.totalorder %s24, 0
      %p46 = por %p44, %p45
      %s47 = ssub.s32 %s18, %s25
      %p48 = scmp.eq.s32.totalorder %s47, 0
      %s50 = sadd.s32 %s49, 1
      %s51 = scalar_select %p48, %s49, %s50
      %p54 = pneg %p48
      %p55 = scmp.eq.s32.totalorder %s18, 1
      %p56 = por %p54, %p55
      %p57 = scmp.ne.s32.totalorder %s49, %s52
      %p58 = scmp.eq.s32.totalorder %s18, 0
      %p59 = por %p57, %p58
      %p60 = scmp.ne.s32.totalorder %s49, %s52
      %p61 = scmp.eq.s32.totalorder %s23, 1
      %p62 = por %p60, %p61
      %p63 = scmp.ne.s32.totalorder %s52, %s53
      %p64 = scmp.eq.s32.totalorder %s23, 0
      %p65 = por %p63, %p64
      %p66 = scmp.ne.s32.totalorder %s52, %s53
      %p67 = scmp.eq.s32.totalorder %s24, 1
      %p68 = por %p66, %p67
      %p70 = scmp.ne.s32.totalorder %s53, %s69
      %p71 = scmp.eq.s32.totalorder %s24, 0
      %p72 = por %p70, %p71
      %s74 = sadd.s32 %s73, 1
      %p77 = scmp.eq.s32.totalorder %s18, 1
      %p78 = scmp.ne.s32.totalorder %s73, %s75
      %p79 = scmp.eq.s32.totalorder %s18, 0
      %p80 = por %p78, %p79
      %p81 = scmp.ne.s32.totalorder %s73, %s75
      %p82 = scmp.eq.s32.totalorder %s23, 1
      %p83 = por %p81, %p82
      %p84 = scmp.ne.s32.totalorder %s75, %s76
      %p85 = scmp.eq.s32.totalorder %s23, 0
      %p86 = por %p84, %p85
      %p87 = scmp.ne.s32.totalorder %s75, %s76
      %p88 = scmp.eq.s32.totalorder %s24, 1
      %p89 = por %p87, %p88
      %p91 = scmp.ne.s32.totalorder %s76, %s90
      %p92 = scmp.eq.s32.totalorder %s24, 0
      %p93 = por %p91, %p92
      %s94 = ssub.s32 %s18, %s25
      %p95 = scmp.eq.s32.totalorder %s94, 0
      %s97 = sadd.s32 %s96, 1
      %s98 = scalar_select %p95, %s96, %s97
      %p101 = pneg %p95
      %p102 = scmp.eq.s32.totalorder %s18, 1
      %p103 = por %p101, %p102
      %p104 = scmp.ne.s32.totalorder %s96, %s99
      %p105 = scmp.eq.s32.totalorder %s18, 0
      %p106 = por %p104, %p105
      %p107 = scmp.ne.s32.totalorder %s96, %s99
      %p108 = scmp.eq.s32.totalorder %s23, 1
      %p109 = por %p107, %p108
      %p110 = scmp.ne.s32.totalorder %s99, %s100
      %p111 = scmp.eq.s32.totalorder %s23, 0
      %p112 = por %p110, %p111
      %p113 = scmp.ne.s32.totalorder %s99, %s100
      %p114 = scmp.eq.s32.totalorder %s24, 1
      %p115 = por %p113, %p114
      %p117 = scmp.ne.s32.totalorder %s100, %s116
      %p118 = scmp.eq.s32.totalorder %s24, 0
      %p119 = por %p117, %p118
      %s121 = sadd.s32 %s120, 1
      %p124 = scmp.eq.s32.totalorder %s18, 1
      %p125 = scmp.ne.s32.totalorder %s120, %s122
      %p126 = scmp.eq.s32.totalorder %s18, 0
      %p127 = por %p125, %p126
      %p128 = scmp.ne.s32.totalorder %s120, %s122
      %p129 = scmp.eq.s32.totalorder %s23, 1
      %p130 = por %p128, %p129
      %p131 = scmp.ne.s32.totalorder %s122, %s123
      %p132 = scmp.eq.s32.totalorder %s23, 0
      %p133 = por %p131, %p132
      %p134 = scmp.ne.s32.totalorder %s122, %s123
      %p135 = scmp.eq.s32.totalorder %s24, 1
      %p136 = por %p134, %p135
      %p138 = scmp.ne.s32.totalorder %s123, %s137
      %p139 = scmp.eq.s32.totalorder %s24, 0
      %p140 = por %p138, %p139
      %s142 = sadd.s32 %s141, 1
      %p145 = scmp.eq.s32.totalorder %s18, 1
      %p146 = scmp.ne.s32.totalorder %s141, %s143
      %p147 = scmp.eq.s32.totalorder %s18, 0
      %p148 = por %p146, %p147
      %p149 = scmp.ne.s32.totalorder %s141, %s143
      %p150 = scmp.eq.s32.totalorder %s23, 1
      %p151 = por %p149, %p150
      %p152 = scmp.ne.s32.totalorder %s143, %s144
      %p153 = scmp.eq.s32.totalorder %s23, 0
      %p154 = por %p152, %p153
      %p155 = scmp.ne.s32.totalorder %s143, %s144
      %p156 = scmp.eq.s32.totalorder %s24, 1
      %p157 = por %p155, %p156
      %p159 = scmp.ne.s32.totalorder %s144, %s158
      %p160 = scmp.eq.s32.totalorder %s24, 0
      %p161 = por %p159, %p160
      %s162 = ssub.s32 %s18, %s25
      %p163 = scmp.eq.s32.totalorder %s162, 0
      %s165 = sadd.s32 %s164, 1
      %s166 = scalar_select %p163, %s164, %s165
      %p169 = pneg %p163
      %p170 = scmp.eq.s32.totalorder %s18, 1
      %p171 = por %p169, %p170
      %p172 = scmp.ne.s32.totalorder %s164, %s167
      %p173 = scmp.eq.s32.totalorder %s18, 0
      %p174 = por %p172, %p173
      %p175 = scmp.ne.s32.totalorder %s164, %s167
      %p176 = scmp.eq.s32.totalorder %s23, 1
      %p177 = por %p175, %p176
      %p178 = scmp.ne.s32.totalorder %s167, %s168
      %p179 = scmp.eq.s32.totalorder %s23, 0
      %p180 = por %p178, %p179
      %p181 = scmp.ne.s32.totalorder %s167, %s168
      %p182 = scmp.eq.s32.totalorder %s24, 1
      %p183 = por %p181, %p182
      %p185 = scmp.ne.s32.totalorder %s168, %s184
      %p186 = scmp.eq.s32.totalorder %s24, 0
      %p187 = por %p185, %p186
      %s188 = ssub.s32 %s18, %s25
      %p189 = scmp.eq.s32.totalorder %s188, 0
      %s191 = sadd.s32 %s190, 1
      %s192 = scalar_select %p189, %s190, %s191
      %p195 = pneg %p189
      %p196 = scmp.eq.s32.totalorder %s18, 1
      %p197 = por %p195, %p196
      %p198 = scmp.ne.s32.totalorder %s190, %s193
      %p199 = scmp.eq.s32.totalorder %s18, 0
      %p200 = por %p198, %p199
      %p201 = scmp.ne.s32.totalorder %s190, %s193
      %p202 = scmp.eq.s32.totalorder %s23, 1
      %p203 = por %p201, %p202
      %p204 = scmp.ne.s32.totalorder %s193, %s194
      %p205 = scmp.eq.s32.totalorder %s23, 0
      %p206 = por %p204, %p205
      %p207 = scmp.ne.s32.totalorder %s193, %s194
      %p208 = scmp.eq.s32.totalorder %s24, 1
      %p209 = por %p207, %p208
      %p211 = scmp.ne.s32.totalorder %s194, %s210
      %p212 = scmp.eq.s32.totalorder %s24, 0
      %p213 = por %p211, %p212
      %p214 = scmp.le.s32.totalorder 1, %s18
      %p215 = scmp.lt.s32.totalorder %s18, 3
      %p216 = pnand %p214, %p215
      %p217 = pneg %p216
      // Predicated region
      $region9: #{tpu_custom_call.1} parent=5 // pred_check
        _
      $region10: #{tpu_custom_call.1} parent=5 // pred_check_branch
        %219 = sbr.rel (%p216) target = $region12
      $region11: #{tpu_custom_call.1} parent=5 // pred_region
        %s220 = ssub.s32 %s18, 1
        // Predicated region
        $region13: #{tpu_custom_call.1} parent=11 // pred_check
          %p221 = pneg %p39
        $region14: #{tpu_custom_call.1} parent=11 // pred_check_branch
          %223 = sbr.rel (%p221) target = $region16
        $region15: #{tpu_custom_call.1} parent=11 // pred_region
          _
        $region16: #{tpu_custom_call.1} parent=11 // pred_fallthru
          _
        // Predicated region
        $region17: #{tpu_custom_call.1} parent=11 // pred_check
          %p224 = pneg %p86
        $region18: #{tpu_custom_call.1} parent=11 // pred_check_branch
          %226 = sbr.rel (%p224) target = $region20
        $region19: #{tpu_custom_call.1} parent=11 // pred_region
          _
        $region20: #{tpu_custom_call.1} parent=11 // pred_fallthru
          _
        // Predicated region
        $region21: #{tpu_custom_call.1} parent=11 // pred_check
          %p227 = pneg %p133
        $region22: #{tpu_custom_call.1} parent=11 // pred_check_branch
          %229 = sbr.rel (%p227) target = $region24
        $region23: #{tpu_custom_call.1} parent=11 // pred_region
          _
        $region24: #{tpu_custom_call.1} parent=11 // pred_fallthru
          _
        // Predicated region
        $region25: #{tpu_custom_call.1} parent=11 // pred_check
          %p230 = pneg %p154
        $region26: #{tpu_custom_call.1} parent=11 // pred_check_branch
          %232 = sbr.rel (%p230) target = $region28
        $region27: #{tpu_custom_call.1} parent=11 // pred_region
          _
        $region28: #{tpu_custom_call.1} parent=11 // pred_fallthru
          _
      $region12: #{tpu_custom_call.1} parent=5 // pred_fallthru
        _
      %p233 = scmp.lt.s32.totalorder %s18, 2
      // Predicated region
      $region29: #{tpu_custom_call.1} parent=5 // pred_check
        %p234 = pneg %p233
      $region30: #{tpu_custom_call.1} parent=5 // pred_check_branch
        %236 = sbr.rel (%p234) target = $region32
      $region31: #{tpu_custom_call.1} parent=5 // pred_region
        // Predicated region
        $region33: #{tpu_custom_call.1} parent=31 // pred_check
          %p237 = pneg %p59
        $region34: #{tpu_custom_call.1} parent=31 // pred_check_branch
          %239 = sbr.rel (%p237) target = $region36
        $region35: #{tpu_custom_call.1} parent=31 // pred_region
          %p240 = scmp.lt.s32.totalorder %s18, 1
          %s241 = scalar_select %p240, %s18, 1
          %s242 = smul.addr %s241, 8
          %s243 = scalar_lea.vmem %s1, %s242
        $region36: #{tpu_custom_call.1} parent=31 // pred_fallthru
          _
        // Predicated region
        $region37: #{tpu_custom_call.1} parent=31 // pred_check
          %p244 = pneg %p106
        $region38: #{tpu_custom_call.1} parent=31 // pred_check_branch
          %246 = sbr.rel (%p244) target = $region40
        $region39: #{tpu_custom_call.1} parent=31 // pred_region
          %p247 = scmp.lt.s32.totalorder %s18, 1
          %s248 = scalar_select %p247, %s18, 1
          %s249 = smul.addr %s248, 4
          %s250 = scalar_lea.vmem %s3, %s249
        $region40: #{tpu_custom_call.1} parent=31 // pred_fallthru
          _
      $region32: #{tpu_custom_call.1} parent=5 // pred_fallthru
        _
      %p251 = scmp.le.s32.totalorder 1, %s18
      %p252 = scmp.lt.s32.totalorder %s18, 3
      %p253 = pnand %p251, %p252
      %p254 = pneg %p253
      // Predicated region
      $region41: #{tpu_custom_call.1} parent=5 // pred_check
        _
      $region42: #{tpu_custom_call.1} parent=5 // pred_check_branch
        %256 = sbr.rel (%p253) target = $region44
      $region43: #{tpu_custom_call.1} parent=5 // pred_region
        %s257 = ssub.s32 %s18, 1
        %p258 = pneg %p39
        %p259 = pneg %p36
        %p260 = scmp.lt.s32.totalorder %s23, 1
        %s261 = scalar_select %p260, %s23, 1
        %s262 = smul.addr %s261, 8
        %s263 = scalar_lea.vmem %s1, %s262
        %p264 = pneg %p65
        %p265 = pneg %p62
        %p266 = pneg %p86
        %p267 = pneg %p83
        %p268 = scmp.lt.s32.totalorder %s23, 1
        %s269 = scalar_select %p268, %s23, 1
        %s270 = smul.addr %s269, 4
        %s271 = scalar_lea.vmem %s3, %s270
        %p272 = pneg %p112
        %p273 = pneg %p109
        %p274 = pneg %p133
        %p275 = pneg %p130
        %p276 = pneg %p154
        %p277 = pneg %p151
        %p278 = pneg %p180
        %p279 = pneg %p177
        %s280 = sand.u32 %s167, 1
        %s281 = scalar_lea.sflag [#allocation4], %s280
        %s282 = sand.u32 %s167, 1
        %s283 = smul.addr %s282, 8
        %s284 = scalar_lea.vmem [#allocation3], %s283
        %p285 = pneg %p206
        %p286 = pneg %p203
        %p287 = scmp.lt.s32.totalorder %s23, 1
        %s288 = scalar_select %p287, %s23, 1
        %s289 = smul.addr %s288, 8
        %s290 = scalar_lea.vmem %s7, %s289
        %p291 = scmp.lt.s32.totalorder %s23, 1
        %s292 = scalar_select %p291, %s23, 1
        %s293 = smul.addr %s292, 8
        %s294 = scalar_lea.vmem %s1, %s293
        %p295 = scmp.lt.s32.totalorder %s23, 1
        %s296 = scalar_select %p295, %s23, 1
        %s297 = smul.addr %s296, 4
        %s298 = scalar_lea.vmem %s3, %s297
        %p299 = scmp.lt.s32.totalorder %s23, 1
        %s300 = scalar_select %p299, %s23, 1
        %s301 = smul.addr %s300, 8
        %s302 = scalar_lea.vmem %s7, %s301
        %s304 = sld [smem:[#allocation2]]
        %v305 = vld [vmem:[%s298] sm:$0xf]
        %v306 = vld [vmem:[%s4] sm:$0xff]
        %v307 = vld [vmem:[%s4 + $0x8] sm:$0xff]
        %v308 = vld [vmem:[%s4 + $0x10] sm:$0xff]
        %v309 = vld [vmem:[%s4 + $0x18] sm:$0xff]
        %v310 = vld [vmem:[%s4 + $0x20] sm:$0xff]
        %v311 = vld [vmem:[%s4 + $0x28] sm:$0xff]
        %v312 = vld [vmem:[%s4 + $0x30] sm:$0xff]
        %v313 = vld [vmem:[%s4 + $0x38] sm:$0xff]
        %v314 = vld [vmem:[%s4 + $0x40] sm:$0xff]
        %v315 = vld [vmem:[%s4 + $0x48] sm:$0xff]
        %v316 = vld [vmem:[%s4 + $0x50] sm:$0xff]
        %v317 = vld [vmem:[%s4 + $0x58] sm:$0xff]
        %v318 = vld [vmem:[%s4 + $0x60] sm:$0xff]
        %v319 = vld [vmem:[%s4 + $0x68] sm:$0xff]
        %v320 = vld [vmem:[%s4 + $0x70] sm:$0xff]
        %v321 = vld [vmem:[%s4 + $0x78] sm:$0xff]
        %v338 = vunpack.c.l.b16 %v306
        %v339 = vunpack.c.h.b16 %v306
        %v340 = vunpack.c.l.b16 %v307
        %v341 = vunpack.c.h.b16 %v307
        %v342 = vunpack.c.l.b16 %v308
        %v343 = vunpack.c.h.b16 %v308
        %v344 = vunpack.c.l.b16 %v309
        %v345 = vunpack.c.h.b16 %v309
        %v346 = vunpack.c.l.b16 %v310
        %v347 = vunpack.c.h.b16 %v310
        %v348 = vunpack.c.l.b16 %v311
        %v349 = vunpack.c.h.b16 %v311
        %v350 = vunpack.c.l.b16 %v312
        %v351 = vunpack.c.h.b16 %v312
        %v352 = vunpack.c.l.b16 %v313
        %v353 = vunpack.c.h.b16 %v313
        %v354 = vunpack.c.l.b16 %v314
        %v355 = vunpack.c.h.b16 %v314
        %v356 = vunpack.c.l.b16 %v315
        %v357 = vunpack.c.h.b16 %v315
        %v358 = vunpack.c.l.b16 %v316
        %v359 = vunpack.c.h.b16 %v316
        %v360 = vunpack.c.l.b16 %v317
        %v361 = vunpack.c.h.b16 %v317
        %v362 = vunpack.c.l.b16 %v318
        %v363 = vunpack.c.h.b16 %v318
        %v364 = vunpack.c.l.b16 %v319
        %v365 = vunpack.c.h.b16 %v319
        %v366 = vunpack.c.l.b16 %v320
        %v367 = vunpack.c.h.b16 %v320
        %v368 = vunpack.c.l.b16 %v321
        %v369 = vunpack.c.h.b16 %v321
        %v370 = vpack.c.b16 %v342, %v338
        %v371 = vpack.c.b16 %v343, %v339
        %v372 = vpack.c.b16 %v344, %v340
        %v373 = vpack.c.b16 %v345, %v341
        %v374 = vpack.c.b16 %v350, %v346
        %v375 = vpack.c.b16 %v351, %v347
        %v376 = vpack.c.b16 %v352, %v348
        %v377 = vpack.c.b16 %v353, %v349
        %v378 = vpack.c.b16 %v358, %v354
        %v379 = vpack.c.b16 %v359, %v355
        %v380 = vpack.c.b16 %v360, %v356
        %v381 = vpack.c.b16 %v361, %v357
        %v382 = vpack.c.b16 %v366, %v362
        %v383 = vpack.c.b16 %v367, %v363
        %v384 = vpack.c.b16 %v368, %v364
        %v385 = vpack.c.b16 %v369, %v365
        %vm402 = vcmask 523264
        %v404 = vsel %vm402, %v305, 0
        %406 = vmatprep.subr.bf16.mxu0 0
        %407 = vmatpush1.bf16.msra.mxu0 0
        %408 = vmatprep.subr.bf16.mxu0 0
        %409 = vmatpush1.bf16.msra.mxu0 0
        %410 = vmatprep.subr.bf16.mxu0 0
        %411 = vmatpush1.bf16.msra.mxu0 0
        %412 = vmatprep.subr.bf16.mxu0 0
        %413 = vmatpush1.bf16.msra.mxu0 0
        %414 = vmatprep.subr.bf16.mxu0 %v383
        %415 = vmatpush1.bf16.msra.mxu0 %v382
        %416 = vmatprep.subr.bf16.mxu0 %v379
        %417 = vmatpush1.bf16.msra.mxu0 %v378
        %418 = vmatprep.subr.bf16.mxu0 %v375
        %419 = vmatpush1.bf16.msra.mxu0 %v374
        %420 = vmatprep.subr.bf16.mxu0 %v371
        %421 = vmatpush1.bf16.msra.mxu0 %v370
        %422 = vmatprep.subr.bf16.mxu0 0
        %423 = vmatpush2.bf16.msra.mxu0 0
        %424 = vmatprep.subr.bf16.mxu0 0
        %425 = vmatpush2.bf16.msra.mxu0 0
        %426 = vmatprep.subr.bf16.mxu0 0
        %427 = vmatpush2.bf16.msra.mxu0 0
        %428 = vmatprep.subr.bf16.mxu0 0
        %429 = vmatpush2.bf16.msra.mxu0 0
        %430 = vmatprep.subr.bf16.mxu0 0
        %431 = vmatpush2.bf16.msra.mxu0 0
        %432 = vmatprep.subr.bf16.mxu0 0
        %433 = vmatpush2.bf16.msra.mxu0 0
        %434 = vmatprep.subr.bf16.mxu0 0
        %435 = vmatpush2.bf16.msra.mxu0 0
        %436 = vmatprep.subr.bf16.mxu0 0
        %437 = vmatpush2.bf16.msra.mxu0 0
        %438 = vmatprep.mubr.bf16.mxu0 0
        %439 = vmatmul.mubr.bf16.gmra.mxu0 %v404
        %v440 = vpop.f32.mrf.mxu0
        %v441 = vadd.f32 0.0, %v440
        %v442 = vpop.f32.mrf.mxu0
        %v443 = vadd.f32 0.0, %v442
        %v444 = vpop.f32.mrf.mxu0
        %v445 = vpop.f32.mrf.mxu0
        %446 = vdwg.mxu0
        %447 = vmatprep.subr.bf16.mxu0 0
        %448 = vmatpush1.bf16.msra.mxu0 0
        %449 = vmatprep.subr.bf16.mxu0 0
        %450 = vmatpush1.bf16.msra.mxu0 0
        %451 = vmatprep.subr.bf16.mxu0 0
        %452 = vmatpush1.bf16.msra.mxu0 0
        %453 = vmatprep.subr.bf16.mxu0 0
        %454 = vmatpush1.bf16.msra.mxu0 0
        %455 = vmatprep.subr.bf16.mxu0 %v385
        %456 = vmatpush1.bf16.msra.mxu0 %v384
        %457 = vmatprep.subr.bf16.mxu0 %v381
        %458 = vmatpush1.bf16.msra.mxu0 %v380
        %459 = vmatprep.subr.bf16.mxu0 %v377
        %460 = vmatpush1.bf16.msra.mxu0 %v376
        %461 = vmatprep.subr.bf16.mxu0 %v373
        %462 = vmatpush1.bf16.msra.mxu0 %v372
        %463 = vmatprep.subr.bf16.mxu0 0
        %464 = vmatpush2.bf16.msra.mxu0 0
        %465 = vmatprep.subr.bf16.mxu0 0
        %466 = vmatpush2.bf16.msra.mxu0 0
        %467 = vmatprep.subr.bf16.mxu0 0
        %468 = vmatpush2.bf16.msra.mxu0 0
        %469 = vmatprep.subr.bf16.mxu0 0
        %470 = vmatpush2.bf16.msra.mxu0 0
        %471 = vmatprep.subr.bf16.mxu0 0
        %472 = vmatpush2.bf16.msra.mxu0 0
        %473 = vmatprep.subr.bf16.mxu0 0
        %474 = vmatpush2.bf16.msra.mxu0 0
        %475 = vmatprep.subr.bf16.mxu0 0
        %476 = vmatpush2.bf16.msra.mxu0 0
        %477 = vmatprep.subr.bf16.mxu0 0
        %478 = vmatpush2.bf16.msra.mxu0 0
        %479 = vmatprep.mubr.bf16.mxu0 0
        %480 = vmatmul.mubr.bf16.gmra.mxu0 %v404
        %v481 = vpop.f32.mrf.mxu0
        %v482 = vadd.f32 0.0, %v481
        %v483 = vpop.f32.mrf.mxu0
        %v484 = vadd.f32 0.0, %v483
        %v485 = vpop.f32.mrf.mxu0
        %v486 = vpop.f32.mrf.mxu0
        %487 = vdwg.mxu0
        %v488 = vld [vmem:[%s2] sm:$0xf]
        %v489 = vld [vmem:[%s294] sm:$0xff]
        %v490 = vlaneseq
        %v491 = vshrl.u32 %v490, 7
        %v492 = vsub.s32 0, %v491
        %v493 = vrot.slane %v488, %v492
        %v494 = vlaneseq
        %v495 = vshrl.u32 %v494, 7
        %v496 = vsub.s32 1, %v495
        %v497 = vrot.slane %v488, %v496
        %v498 = vlaneseq
        %v499 = vshrl.u32 %v498, 7
        %v500 = vsub.s32 2, %v499
        %v501 = vrot.slane %v488, %v500
        %v502 = vlaneseq
        %v503 = vshrl.u32 %v502, 7
        %v504 = vsub.s32 3, %v503
        %v505 = vrot.slane %v488, %v504
        %506 = vset.pattern.permute.xlu0 0
        %507 = vperm.xlu0 %506, %v489
        %v508 = vpop.permute.xlu0 %507
        %vm509 = vcmp.eq.s32.totalorder %v493, %v508
        %vm510 = vcmp.eq.s32.totalorder %v497, %v508
        %vm511 = vcmp.eq.s32.totalorder %v501, %v508
        %vm512 = vcmp.eq.s32.totalorder %v505, %v508
        %v513 = vsel %vm509, %v441, -inf
        %v514 = vsel %vm510, %v443, -inf
        %v515 = vsel %vm511, %v482, -inf
        %v516 = vsel %vm512, %v484, -inf
        %v517 = vmax.f32 %v513, %v514
        %v518 = vmax.f32 %v515, %v516
        %v519 = vmax.f32 %v517, %v518
        %520 = vmax.xlane.f32.xlu0 %v519
        %v521 = vpop.xlane.xlu0 %520
        %v522 = vsub.f32 %v441, %v521
        %v523 = vsub.f32 %v443, %v521
        %v524 = vsub.f32 %v482, %v521
        %v525 = vsub.f32 %v484, %v521
        %v526 = vstv %s304
        %v527 = vmul.f32 %v522, %v526
        %v528 = vmul.f32 %v523, %v526
        %v529 = vmul.f32 %v524, %v526
        %v530 = vmul.f32 %v525, %v526
        %v531 = vmul.f32 %v527, 1.442695
        %v532 = vpow.pop %v531
        %v533 = vmul.f32 %v528, 1.442695
        %v534 = vpow.pop %v533
        %v535 = vmul.f32 %v529, 1.442695
        %v536 = vpow.pop %v535
        %v537 = vmul.f32 %v530, 1.442695
        %v538 = vpow.pop %v537
        %v539 = vsel %vm509, %v532, 0.0
        %v540 = vsel %vm510, %v534, 0.0
        %v541 = vsel %vm511, %v536, 0.0
        %v542 = vsel %vm512, %v538, 0.0
        %v543 = vadd.f32 %v539, %v540
        %v544 = vadd.f32 %v543, %v541
        %v545 = vadd.f32 %v544, %v542
        %546 = vadd.xlane.f32.xlu0 %v545
        %v547 = vpop.xlane.xlu0 %546
        %v548 = vpack.c.bf16 %v539, %v539
        %v549 = vpack.c.bf16 %v540, %v540
        %v550 = vpack.c.bf16 %v541, %v541
        %v551 = vpack.c.bf16 %v542, %v542
        %v552 = vld [vmem:[%s5] sm:$0xf]
        %v553 = vld [vmem:[%s5 + $0x4] sm:$0xf]
        %v554 = vld [vmem:[%s5 + $0x8] sm:$0xf]
        %v555 = vld [vmem:[%s5 + $0xc] sm:$0xf]
        %v556 = vld [vmem:[%s5 + $0x10] sm:$0xf]
        %v557 = vld [vmem:[%s5 + $0x14] sm:$0xf]
        %v558 = vld [vmem:[%s5 + $0x18] sm:$0xf]
        %v559 = vld [vmem:[%s5 + $0x1c] sm:$0xf]
        %v560 = vld [vmem:[%s5 + $0x20] sm:$0xf]
        %v561 = vld [vmem:[%s5 + $0x24] sm:$0xf]
        %v562 = vld [vmem:[%s5 + $0x28] sm:$0xf]
        %v563 = vld [vmem:[%s5 + $0x2c] sm:$0xf]
        %v564 = vld [vmem:[%s5 + $0x30] sm:$0xf]
        %v565 = vld [vmem:[%s5 + $0x34] sm:$0xf]
        %v566 = vld [vmem:[%s5 + $0x38] sm:$0xf]
        %v567 = vld [vmem:[%s5 + $0x3c] sm:$0xf]
        %v568 = vld [vmem:[%s5 + $0x40] sm:$0xf]
        %v569 = vld [vmem:[%s5 + $0x44] sm:$0xf]
        %v570 = vld [vmem:[%s5 + $0x48] sm:$0xf]
        %v571 = vld [vmem:[%s5 + $0x4c] sm:$0xf]
        %v572 = vld [vmem:[%s5 + $0x50] sm:$0xf]
        %v573 = vld [vmem:[%s5 + $0x54] sm:$0xf]
        %v574 = vld [vmem:[%s5 + $0x58] sm:$0xf]
        %v575 = vld [vmem:[%s5 + $0x5c] sm:$0xf]
        %v576 = vld [vmem:[%s5 + $0x60] sm:$0xf]
        %v577 = vld [vmem:[%s5 + $0x64] sm:$0xf]
        %v578 = vld [vmem:[%s5 + $0x68] sm:$0xf]
        %v579 = vld [vmem:[%s5 + $0x6c] sm:$0xf]
        %v580 = vld [vmem:[%s5 + $0x70] sm:$0xf]
        %v581 = vld [vmem:[%s5 + $0x74] sm:$0xf]
        %v582 = vld [vmem:[%s5 + $0x78] sm:$0xf]
        %v583 = vld [vmem:[%s5 + $0x7c] sm:$0xf]
        %v584 = vld [vmem:[%s5 + $0x80] sm:$0xf]
        %v585 = vld [vmem:[%s5 + $0x84] sm:$0xf]
        %v586 = vld [vmem:[%s5 + $0x88] sm:$0xf]
        %v587 = vld [vmem:[%s5 + $0x8c] sm:$0xf]
        %v588 = vld [vmem:[%s5 + $0x90] sm:$0xf]
        %v589 = vld [vmem:[%s5 + $0x94] sm:$0xf]
        %v590 = vld [vmem:[%s5 + $0x98] sm:$0xf]
        %v591 = vld [vmem:[%s5 + $0x9c] sm:$0xf]
        %v592 = vld [vmem:[%s5 + $0xa0] sm:$0xf]
        %v593 = vld [vmem:[%s5 + $0xa4] sm:$0xf]
        %v594 = vld [vmem:[%s5 + $0xa8] sm:$0xf]
        %v595 = vld [vmem:[%s5 + $0xac] sm:$0xf]
        %v596 = vld [vmem:[%s5 + $0xb0] sm:$0xf]
        %v597 = vld [vmem:[%s5 + $0xb4] sm:$0xf]
        %v598 = vld [vmem:[%s5 + $0xb8] sm:$0xf]
        %v599 = vld [vmem:[%s5 + $0xbc] sm:$0xf]
        %v600 = vld [vmem:[%s5 + $0xc0] sm:$0xf]
        %v601 = vld [vmem:[%s5 + $0xc4] sm:$0xf]
        %v602 = vld [vmem:[%s5 + $0xc8] sm:$0xf]
        %v603 = vld [vmem:[%s5 + $0xcc] sm:$0xf]
        %v604 = vld [vmem:[%s5 + $0xd0] sm:$0xf]
        %v605 = vld [vmem:[%s5 + $0xd4] sm:$0xf]
        %v606 = vld [vmem:[%s5 + $0xd8] sm:$0xf]
        %v607 = vld [vmem:[%s5 + $0xdc] sm:$0xf]
        %v608 = vld [vmem:[%s5 + $0xe0] sm:$0xf]
        %v609 = vld [vmem:[%s5 + $0xe4] sm:$0xf]
        %v610 = vld [vmem:[%s5 + $0xe8] sm:$0xf]
        %v611 = vld [vmem:[%s5 + $0xec] sm:$0xf]
        %v612 = vld [vmem:[%s5 + $0xf0] sm:$0xf]
        %v613 = vld [vmem:[%s5 + $0xf4] sm:$0xf]
        %v614 = vld [vmem:[%s5 + $0xf8] sm:$0xf]
        %v615 = vld [vmem:[%s5 + $0xfc] sm:$0xf]
        %v680 = vunpack.c.l.b16 %v552
        %v681 = vunpack.c.l.b16 %v553
        %v682 = vunpack.c.l.b16 %v554
        %v683 = vunpack.c.l.b16 %v555
        %v684 = vunpack.c.l.b16 %v556
        %v685 = vunpack.c.l.b16 %v557
        %v686 = vunpack.c.l.b16 %v558
        %v687 = vunpack.c.l.b16 %v559
        %v688 = vunpack.c.l.b16 %v560
        %v689 = vunpack.c.l.b16 %v561
        %v690 = vunpack.c.l.b16 %v562
        %v691 = vunpack.c.l.b16 %v563
        %v692 = vunpack.c.l.b16 %v564
        %v693 = vunpack.c.l.b16 %v565
        %v694 = vunpack.c.l.b16 %v566
        %v695 = vunpack.c.l.b16 %v567
        %v696 = vunpack.c.l.b16 %v568
        %v697 = vunpack.c.l.b16 %v569
        %v698 = vunpack.c.l.b16 %v570
        %v699 = vunpack.c.l.b16 %v571
        %v700 = vunpack.c.l.b16 %v572
        %v701 = vunpack.c.l.b16 %v573
        %v702 = vunpack.c.l.b16 %v574
        %v703 = vunpack.c.l.b16 %v575
        %v704 = vunpack.c.l.b16 %v576
        %v705 = vunpack.c.l.b16 %v577
        %v706 = vunpack.c.l.b16 %v578
        %v707 = vunpack.c.l.b16 %v579
        %v708 = vunpack.c.l.b16 %v580
        %v709 = vunpack.c.l.b16 %v581
        %v710 = vunpack.c.l.b16 %v582
        %v711 = vunpack.c.l.b16 %v583
        %v712 = vunpack.c.l.b16 %v584
        %v713 = vunpack.c.l.b16 %v585
        %v714 = vunpack.c.l.b16 %v586
        %v715 = vunpack.c.l.b16 %v587
        %v716 = vunpack.c.l.b16 %v588
        %v717 = vunpack.c.l.b16 %v589
        %v718 = vunpack.c.l.b16 %v590
        %v719 = vunpack.c.l.b16 %v591
        %v720 = vunpack.c.l.b16 %v592
        %v721 = vunpack.c.l.b16 %v593
        %v722 = vunpack.c.l.b16 %v594
        %v723 = vunpack.c.l.b16 %v595
        %v724 = vunpack.c.l.b16 %v596
        %v725 = vunpack.c.l.b16 %v597
        %v726 = vunpack.c.l.b16 %v598
        %v727 = vunpack.c.l.b16 %v599
        %v728 = vunpack.c.l.b16 %v600
        %v729 = vunpack.c.l.b16 %v601
        %v730 = vunpack.c.l.b16 %v602
        %v731 = vunpack.c.l.b16 %v603
        %v732 = vunpack.c.l.b16 %v604
        %v733 = vunpack.c.l.b16 %v605
        %v734 = vunpack.c.l.b16 %v606
        %v735 = vunpack.c.l.b16 %v607
        %v736 = vunpack.c.l.b16 %v608
        %v737 = vunpack.c.l.b16 %v609
        %v738 = vunpack.c.l.b16 %v610
        %v739 = vunpack.c.l.b16 %v611
        %v740 = vunpack.c.l.b16 %v612
        %v741 = vunpack.c.l.b16 %v613
        %v742 = vunpack.c.l.b16 %v614
        %v743 = vunpack.c.l.b16 %v615
        %v744 = vpack.c.b16 %v681, %v680
        %v745 = vpack.c.b16 %v683, %v682
        %v746 = vpack.c.b16 %v685, %v684
        %v747 = vpack.c.b16 %v687, %v686
        %v748 = vpack.c.b16 %v689, %v688
        %v749 = vpack.c.b16 %v691, %v690
        %v750 = vpack.c.b16 %v693, %v692
        %v751 = vpack.c.b16 %v695, %v694
        %v752 = vpack.c.b16 %v697, %v696
        %v753 = vpack.c.b16 %v699, %v698
        %v754 = vpack.c.b16 %v701, %v700
        %v755 = vpack.c.b16 %v703, %v702
        %v756 = vpack.c.b16 %v705, %v704
        %v757 = vpack.c.b16 %v707, %v706
        %v758 = vpack.c.b16 %v709, %v708
        %v759 = vpack.c.b16 %v711, %v710
        %v760 = vpack.c.b16 %v713, %v712
        %v761 = vpack.c.b16 %v715, %v714
        %v762 = vpack.c.b16 %v717, %v716
        %v763 = vpack.c.b16 %v719, %v718
        %v764 = vpack.c.b16 %v721, %v720
        %v765 = vpack.c.b16 %v723, %v722
        %v766 = vpack.c.b16 %v725, %v724
        %v767 = vpack.c.b16 %v727, %v726
        %v768 = vpack.c.b16 %v729, %v728
        %v769 = vpack.c.b16 %v731, %v730
        %v770 = vpack.c.b16 %v733, %v732
        %v771 = vpack.c.b16 %v735, %v734
        %v772 = vpack.c.b16 %v737, %v736
        %v773 = vpack.c.b16 %v739, %v738
        %v774 = vpack.c.b16 %v741, %v740
        %v775 = vpack.c.b16 %v743, %v742
        %808 = vmatprep.subr.bf16.mxu0 0
        %809 = vmatpush1.bf16.msra.mxu0 %v751
        %810 = vmatprep.subr.bf16.mxu0 0
        %811 = vmatpush1.bf16.msra.mxu0 %v750
        %812 = vmatprep.subr.bf16.mxu0 0
        %813 = vmatpush1.bf16.msra.mxu0 %v749
        %814 = vmatprep.subr.bf16.mxu0 0
        %815 = vmatpush1.bf16.msra.mxu0 %v748
        %816 = vmatprep.subr.bf16.mxu0 0
        %817 = vmatpush1.bf16.msra.mxu0 %v747
        %818 = vmatprep.subr.bf16.mxu0 0
        %819 = vmatpush1.bf16.msra.mxu0 %v746
        %820 = vmatprep.subr.bf16.mxu0 0
        %821 = vmatpush1.bf16.msra.mxu0 %v745
        %822 = vmatprep.subr.bf16.mxu0 0
        %823 = vmatpush1.bf16.msra.mxu0 %v744
        %824 = vmatprep.subr.bf16.mxu0 0
        %825 = vmatpush2.bf16.msra.mxu0 %v759
        %826 = vmatprep.subr.bf16.mxu0 0
        %827 = vmatpush2.bf16.msra.mxu0 %v758
        %828 = vmatprep.subr.bf16.mxu0 0
        %829 = vmatpush2.bf16.msra.mxu0 %v757
        %830 = vmatprep.subr.bf16.mxu0 0
        %831 = vmatpush2.bf16.msra.mxu0 %v756
        %832 = vmatprep.subr.bf16.mxu0 0
        %833 = vmatpush2.bf16.msra.mxu0 %v755
        %834 = vmatprep.subr.bf16.mxu0 0
        %835 = vmatpush2.bf16.msra.mxu0 %v754
        %836 = vmatprep.subr.bf16.mxu0 0
        %837 = vmatpush2.bf16.msra.mxu0 %v753
        %838 = vmatprep.subr.bf16.mxu0 0
        %839 = vmatpush2.bf16.msra.mxu0 %v752
        %840 = vmatprep.mubr.bf16.mxu0 %v549
        %841 = vmatmul.mubr.bf16.gmra.mxu0 %v548
        %v842 = vpop.f32.mrf.mxu0
        %v843 = vadd.f32 0.0, %v842
        %v844 = vpop.f32.mrf.mxu0
        %v845 = vpop.f32.mrf.mxu0
        %v846 = vpop.f32.mrf.mxu0
        %847 = vdwg.mxu0
        %848 = vmatprep.subr.bf16.mxu0 0
        %849 = vmatpush1.bf16.msra.mxu0 %v767
        %850 = vmatprep.subr.bf16.mxu0 0
        %851 = vmatpush1.bf16.msra.mxu0 %v766
        %852 = vmatprep.subr.bf16.mxu0 0
        %853 = vmatpush1.bf16.msra.mxu0 %v765
        %854 = vmatprep.subr.bf16.mxu0 0
        %855 = vmatpush1.bf16.msra.mxu0 %v764
        %856 = vmatprep.subr.bf16.mxu0 0
        %857 = vmatpush1.bf16.msra.mxu0 %v763
        %858 = vmatprep.subr.bf16.mxu0 0
        %859 = vmatpush1.bf16.msra.mxu0 %v762
        %860 = vmatprep.subr.bf16.mxu0 0
        %861 = vmatpush1.bf16.msra.mxu0 %v761
        %862 = vmatprep.subr.bf16.mxu0 0
        %863 = vmatpush1.bf16.msra.mxu0 %v760
        %864 = vmatprep.subr.bf16.mxu0 0
        %865 = vmatpush2.bf16.msra.mxu0 %v775
        %866 = vmatprep.subr.bf16.mxu0 0
        %867 = vmatpush2.bf16.msra.mxu0 %v774
        %868 = vmatprep.subr.bf16.mxu0 0
        %869 = vmatpush2.bf16.msra.mxu0 %v773
        %870 = vmatprep.subr.bf16.mxu0 0
        %871 = vmatpush2.bf16.msra.mxu0 %v772
        %872 = vmatprep.subr.bf16.mxu0 0
        %873 = vmatpush2.bf16.msra.mxu0 %v771
        %874 = vmatprep.subr.bf16.mxu0 0
        %875 = vmatpush2.bf16.msra.mxu0 %v770
        %876 = vmatprep.subr.bf16.mxu0 0
        %877 = vmatpush2.bf16.msra.mxu0 %v769
        %878 = vmatprep.subr.bf16.mxu0 0
        %879 = vmatpush2.bf16.msra.mxu0 %v768
        %880 = vmatprep.mubr.bf16.mxu0 %v551
        %881 = vmatmul.mubr.bf16.gmra.mxu0 %v550
        %v882 = vpop.f32.mrf.mxu0
        %v883 = vadd.f32 %v843, %v882
        %v884 = vpop.f32.mrf.mxu0
        %v885 = vpop.f32.mrf.mxu0
        %v886 = vpop.f32.mrf.mxu0
        %887 = vdwg.mxu0
        %v888 = vrcp.pop %v547
        %v889 = vmul.f32 %v883, %v888
        %890 = vst.msk [vmem:[%s284] sm:$0xff] %vm402, %v889
        %v891 = vlaneseq
        %v892 = vand.u32 %v891, 127
        %v893 = vadd.s32 %v892, 128
        %v894 = vadd.s32 %v892, 256
        %v895 = vadd.s32 %v892, 384
        %vm896 = vcmp.eq.f32.partialorder %v441, %v521
        %vm897 = vcmp.eq.f32.partialorder %v443, %v521
        %vm898 = vcmp.eq.f32.partialorder %v482, %v521
        %vm899 = vcmp.eq.f32.partialorder %v484, %v521
        %vm900 = vmand %vm509, %vm896
        %vm901 = vmand %vm510, %vm897
        %vm902 = vmand %vm511, %vm898
        %vm903 = vmand %vm512, %vm899
        %v904 = vsel %vm900, %v892, 512
        %v905 = vsel %vm901, %v893, 512
        %v906 = vsel %vm902, %v894, 512
        %v907 = vsel %vm903, %v895, 512
        %vm908 = vcmp.lt.s32.totalorder %v904, %v905
        %v909 = vsel %vm908, %v904, %v905
        %vm910 = vcmp.lt.s32.totalorder %v906, %v907
        %v911 = vsel %vm910, %v906, %v907
        %vm912 = vcmp.lt.s32.totalorder %v909, %v911
        %v913 = vsel %vm912, %v909, %v911
        %v914 = vand.u32 %v913, 65535
        %v915 = vshra.s32 %v913, 16
        %v916 = vcvt.s32.f32 %v914
        %v917 = vcvt.s32.f32 %v915
        %918 = vmin.xlane.f32.xlu0 %v917
        %v919 = vpop.xlane.xlu0 %918
        %vm920 = vcmp.eq.f32.partialorder %v917, %v919
        %v921 = vsel %vm920, %v916, inf
        %922 = vmin.xlane.f32.xlu0 %v921
        %v923 = vpop.xlane.xlu0 %922
        %v924 = vcvt.f32.s32 %v923
        %v925 = vcvt.f32.s32 %v919
        %v926 = vshll.u32 %v925, 16
        %v927 = vadd.s32 %v926, %v924
        %vm928 = vcmask 7168
        %929 = vst.msk [vmem:[%s302] sm:$0xff] %vm928, %v927
        %s930 = sand.u32 %s167, 1
        %s931 = scalar_lea.sflag [#allocation4], %s930
        %s932 = sand.u32 %s167, 1
        %s933 = smul.addr %s932, 8
        %s934 = scalar_lea.vmem [#allocation3], %s933
        %p935 = scmp.lt.s32.totalorder %s23, 1
        %s936 = scalar_select %p935, %s23, 1
        %s937 = smul.addr %s936, 8
        %s938 = scalar_lea.vmem %s7, %s937
        // Predicated region
        $region45: #{tpu_custom_call.1} parent=43 // pred_check
          %p939 = pneg %p177
        $region46: #{tpu_custom_call.1} parent=43 // pred_check_branch
          %941 = sbr.rel (%p939) target = $region48
        $region47: #{tpu_custom_call.1} parent=43 // pred_region
          %s943 = ssub.s32 128, 128
          %944 = vsyncadd %s931, %s943
          %s945 = smul.addr %s23, 128
          %s946 = scalar_lea.hbm %s6, %s945
          %s948 = sshll.u32 %s934, 4
          %s949 = int_to_ptr.vmem [resolvable:$true] %s948
          %951 = dma.vmem_to_hbm [thread:$0]  %s949, 128, %s946, %s931
        $region48: #{tpu_custom_call.1} parent=43 // pred_fallthru
          _
        // Predicated region
        $region49: #{tpu_custom_call.1} parent=43 // pred_check
          %p952 = pneg %p203
        $region50: #{tpu_custom_call.1} parent=43 // pred_check_branch
          %954 = sbr.rel (%p952) target = $region52
        $region51: #{tpu_custom_call.1} parent=43 // pred_region
          _
        $region52: #{tpu_custom_call.1} parent=43 // pred_fallthru
          _
      $region44: #{tpu_custom_call.1} parent=5 // pred_fallthru
        _
      %p955 = scmp.le.s32.totalorder 2, %s18
      // Predicated region
      $region53: #{tpu_custom_call.1} parent=5 // pred_check
        %p956 = pneg %p955
      $region54: #{tpu_custom_call.1} parent=5 // pred_check_branch
        %958 = sbr.rel (%p956) target = $region56
      $region55: #{tpu_custom_call.1} parent=5 // pred_region
        %s959 = ssub.s32 %s18, 2
        // Predicated region
        $region57: #{tpu_custom_call.1} parent=55 // pred_check
          %p960 = pneg %p183
        $region58: #{tpu_custom_call.1} parent=55 // pred_check_branch
          %962 = sbr.rel (%p960) target = $region60
        $region59: #{tpu_custom_call.1} parent=55 // pred_region
          %s963 = sand.u32 %s168, 1
          %s964 = scalar_lea.sflag [#allocation4], %s963
          %s965 = sand.u32 %s168, 1
          %s966 = smul.addr %s965, 8
          %s967 = scalar_lea.vmem [#allocation3], %s966
          %968 = dma.done %s964, 128
        $region60: #{tpu_custom_call.1} parent=55 // pred_fallthru
          _
        // Predicated region
        $region61: #{tpu_custom_call.1} parent=55 // pred_check
          %p969 = pneg %p209
        $region62: #{tpu_custom_call.1} parent=55 // pred_check_branch
          %971 = sbr.rel (%p969) target = $region64
        $region63: #{tpu_custom_call.1} parent=55 // pred_region
          %p972 = scmp.lt.s32.totalorder %s24, 1
          %s973 = scalar_select %p972, %s24, 1
          %s974 = smul.addr %s973, 8
          %s975 = scalar_lea.vmem %s7, %s974
        $region64: #{tpu_custom_call.1} parent=55 // pred_fallthru
          _
      $region56: #{tpu_custom_call.1} parent=5 // pred_fallthru
        _
    $region6: #{tpu_custom_call.1} parent=1 // loop_footer
      %s22 = sadd.s32 1, %s18
    $region7: #{tpu_custom_call.1} parent=1 // loop_footer_branch
      %17 = sbr.rel target = $region3
    $region8: #{tpu_custom_call.1} parent=1 // loop_exit
      _
    %976 = vsyncpa [#allocation4], 1
    %s977 = scalar_lea.sflag [#allocation4], 1
    %978 = vsyncpa %s977, 1

</llo_original>
